<compile_context>
chip_gen: v7x
topology: tpu7x:2x2x1
jax: 0.10.0
libtpu: 0.0.40
codegen_flags: <defaults>
</compile_context>

<pallas_src>
import jax
import jax.numpy as jnp
from jax.experimental import pallas as pl
from jax.experimental.pallas import tpu as pltpu


def _round_up(n, m):
    return (n + m - 1) // m * m


def _make_kernel(n_f, out_dim):
    """Build the fused decoder kernel for `n_f` hidden blocks.

    Ref order per grid step:
      x_ref   [tile_n, d_in]        f32  (cast to bf16 in-kernel)
      per hidden block: w' bf16 [prev_pad, h_pad], b' f32 [1, h_pad]
        (Linear bias + eval BatchNorm affine pre-folded into w'/b')
      w_out'  bf16 [h_last_pad, o_pad], b_out' f32 [1, o_pad]
        (b_out' carries -1e30 in padded lanes -> doubles as the softmax mask)
      out_ref [tile_n, out_dim]     f32
    """
    def kernel(*refs):
        x_ref, out_ref = refs[0], refs[-1]
        h = x_ref[...].astype(jnp.bfloat16)               # VPU cast, in-kernel
        idx = 1
        for _ in range(n_f):
            w_ref, b_ref = refs[idx], refs[idx + 1]
            idx += 2
            a = jnp.dot(h, w_ref[...], preferred_element_type=jnp.float32)
            a = jnp.maximum(a + b_ref[...], 0.0)  # folded bias+BN, then ReLU
            h = a.astype(jnp.bfloat16)            # Dropout = identity (eval)
        w_ref, b_ref = refs[idx], refs[idx + 1]
        logits = jnp.dot(h, w_ref[...], preferred_element_type=jnp.float32)
        logits = logits + b_ref[...]       # bias; pad lanes get -1e30 (mask)

        # log_softmax; padded lanes are already ~-1e30 so exp underflows to 0.
        m = jnp.max(logits, axis=-1, keepdims=True)
        z = logits - m
        lse = jnp.log(jnp.sum(jnp.exp(z), axis=-1, keepdims=True))
        out_ref[...] = (z - lse)[:, :out_dim]

    return kernel


def se2p_c1_forward(x, params, *, eps=1e-5, tile_n=1024):
    """x: [N, D_in] f32.  params: {'hidden': [{w,b,gamma,beta,mean,var}, ...],
    'w_out': [H_last, out_dim], 'b_out': [out_dim]}."""
    N, d_in = x.shape
    out_dim = params["w_out"].shape[1]

    # Row tile: as large as requested, but keep >= 2 grid steps when N allows
    # (so the "parallel" row axis can shard across v7x's 2 TensorCores); tile
    # rows kept a multiple of 8 (sublane constraint).
    tile_n = max(8, min(tile_n, _round_up(pl.cdiv(N, 2), 8)))
    n_pad = _round_up(N, tile_n)
    o_pad = _round_up(out_dim, 128)

    # x streams in f32 with its natural feature width.  Only row-pad (cheap,
    # and skipped entirely when N is already a tile multiple).
    x_p = jnp.pad(x, ((0, n_pad - N), (0, 0))) if n_pad != N else x

    args = [x_p]
    in_specs = [pl.BlockSpec((tile_n, d_in), lambda i: (i, 0))]

    prev_pad = d_in                      # width of h entering the next layer
    flops = 0
    for lyr in params["hidden"]:
        k_in, h_out = lyr["w"].shape
        h_pad = _round_up(h_out, 128)
        # Fold BatchNorm1d (eval) affine + Linear bias into the weights.
        scale = lyr["gamma"] * jax.lax.rsqrt(lyr["var"] + eps)
        shift = lyr["beta"] - lyr["mean"] * scale
        w_f = lyr["w"] * scale[None, :]
        b_f = lyr["b"] * scale + shift
        w_p = jnp.pad(w_f, ((0, prev_pad - k_in), (0, h_pad - h_out))
                      ).astype(jnp.bfloat16)
        b_p = jnp.pad(b_f.reshape(1, -1), ((0, 0), (0, h_pad - h_out))
                      ).astype(jnp.float32)
        args += [w_p, b_p]
        in_specs += [pl.BlockSpec((prev_pad, h_pad), lambda i: (0, 0)),
                     pl.BlockSpec((1, h_pad), lambda i: (0, 0))]
        flops += 2 * n_pad * prev_pad * h_pad
        prev_pad = h_pad

    k_in = params["w_out"].shape[0]
    w_out_p = jnp.pad(params["w_out"],
                      ((0, prev_pad - k_in), (0, o_pad - out_dim))
                      ).astype(jnp.bfloat16)
    # Padded output lanes of the bias are -1e30: acts as the additive softmax
    # mask, so no iota/compare/select is needed inside the kernel.
    b_out_p = jnp.pad(params["b_out"].reshape(1, -1).astype(jnp.float32),
                      ((0, 0), (0, o_pad - out_dim)), constant_values=-1e30)
    args += [w_out_p, b_out_p]
    in_specs += [pl.BlockSpec((prev_pad, o_pad), lambda i: (0, 0)),
                 pl.BlockSpec((1, o_pad), lambda i: (0, 0))]
    flops += 2 * n_pad * prev_pad * o_pad

    # Advisory cost estimate for XLA scheduling around the custom call.
    weight_bytes = sum(int(a.size) * a.dtype.itemsize for a in args[1:])
    bytes_accessed = int(x_p.size) * 4 + n_pad * out_dim * 4 + weight_bytes
    cost = pl.CostEstimate(flops=int(flops),
                           transcendentals=int(n_pad * o_pad),
                           bytes_accessed=int(bytes_accessed))

    out = pl.pallas_call(
        _make_kernel(len(params["hidden"]), out_dim),
        out_shape=jax.ShapeDtypeStruct((n_pad, out_dim), jnp.float32),
        grid=(n_pad // tile_n,),
        in_specs=in_specs,
        out_specs=pl.BlockSpec((tile_n, out_dim), lambda i: (i, 0)),
        compiler_params=pltpu.CompilerParams(
            dimension_semantics=("parallel",),
            vmem_limit_bytes=32 * 1024 * 1024),
        cost_estimate=cost,
    )(*args)

    return out[:N]


def _linear_params(key, fan_in, fan_out):
    """Emulate nn.Linear.reset_parameters: U(-k, k), k = 1/sqrt(fan_in).
    Weight stored transposed as [fan_in, fan_out] so the kernel does x @ W."""
    k = 1.0 / (fan_in ** 0.5)
    kw, kb = jax.random.split(key)
    w = jax.random.uniform(kw, (fan_in, fan_out), jnp.float32, -k, k)
    b = jax.random.uniform(kb, (fan_out,), jnp.float32, -k, k)
    return w, b


def _reference(x, params, eps=1e-5, match_kernel_dtypes=False):
    """Pure-JAX reference. match_kernel_dtypes=True replays the kernel's
    folded-affine, bf16-operand / f32-accumulate dtype path exactly."""
    h = x
    for lyr in params["hidden"]:
        scale = lyr["gamma"] * jax.lax.rsqrt(lyr["var"] + eps)
        shift = lyr["beta"] - lyr["mean"] * scale
        if match_kernel_dtypes:
            w = (lyr["w"] * scale[None, :]).astype(jnp.bfloat16)
            b = lyr["b"] * scale + shift
            a = jnp.dot(h.astype(jnp.bfloat16), w,
                        preferred_element_type=jnp.float32) + b
        else:
            a = jnp.dot(h, lyr["w"]) + lyr["b"]
            a = a * scale + shift
        h = jnp.maximum(a, 0.0)
    if match_kernel_dtypes:
        logits = jnp.dot(h.astype(jnp.bfloat16),
                         params["w_out"].astype(jnp.bfloat16),
                         preferred_element_type=jnp.float32) + params["b_out"]
    else:
        logits = jnp.dot(h, params["w_out"]) + params["b_out"]
    return jax.nn.log_softmax(logits, axis=-1)


if __name__ == "__main__":
    # Synthetic "args": n_f=2, hidden_factor=2, activation='ReLU',
    # batch_norm=True (SE2P_C1), dropout in eval mode, dataset triggers
    # log_softmax.  hidden_sizes = [64, 32, 16], output_dim = 10.
    input_dim, output_dim, n_f, hidden_factor = 64, 10, 2, 2
    N = 500  # deliberately not a multiple of the row tile

    key = jax.random.PRNGKey(0)
    key, kx = jax.random.split(key)
    x = jax.random.normal(kx, (N, input_dim), jnp.float32)

    hidden_sizes = [input_dim] + [input_dim // hidden_factor ** (i + 1)
                                  for i in range(n_f)]

    hidden = []
    for i in range(n_f):
        key, kl, kg, kb, km, kv = jax.random.split(key, 6)
        w, b = _linear_params(kl, hidden_sizes[i], hidden_sizes[i + 1])
        h = hidden_sizes[i + 1]
        hidden.append(dict(
            w=w, b=b,
            gamma=jax.random.uniform(kg, (h,), jnp.float32, 0.5, 1.5),
            beta=0.1 * jax.random.normal(kb, (h,), jnp.float32),
            mean=0.1 * jax.random.normal(km, (h,), jnp.float32),
            var=jax.random.uniform(kv, (h,), jnp.float32, 0.5, 1.5),
        ))
    key, ko = jax.random.split(key)
    w_out, b_out = _linear_params(ko, hidden_sizes[-1], output_dim)
    params = dict(hidden=hidden, w_out=w_out, b_out=b_out)

    out = se2p_c1_forward(x, params)   # default tile_n=1024, capped to N/2
    out = jax.block_until_ready(out)

    ref_match = _reference(x, params, match_kernel_dtypes=True)
    ref_f32 = _reference(x, params, match_kernel_dtypes=False)

    assert out.shape == (N, output_dim)
    assert jnp.allclose(out, ref_match, atol=2e-3, rtol=2e-3), \
        "mismatch vs dtype-matched JAX reference"
    assert jnp.allclose(out, ref_f32, atol=5e-2, rtol=5e-2), \
        "mismatch vs full-f32 JAX reference"

    # TODO(synk): Dropout / BatchNorm1d train-mode batch statistics are not
    # modeled (eval-mode inference semantics only).
    print("KERNEL_OK")
</pallas_src>

<mosaic_0001>
module attributes {stable_mosaic.version = 11 : i64} {
  func.func @kernel(%arg0: i32, %arg1: memref<256x64xf32, #tpu.memory_space<vmem>>, %arg2: memref<64x128xbf16, #tpu.memory_space<vmem>>, %arg3: memref<1x128xf32, #tpu.memory_space<vmem>>, %arg4: memref<128x128xbf16, #tpu.memory_space<vmem>>, %arg5: memref<1x128xf32, #tpu.memory_space<vmem>>, %arg6: memref<128x128xbf16, #tpu.memory_space<vmem>>, %arg7: memref<1x128xf32, #tpu.memory_space<vmem>>, %arg8: memref<256x10xf32, #tpu.memory_space<vmem>>) attributes {dimension_semantics = [#tpu.dimension_semantics<parallel>], iteration_bounds = array<i64: 2>, scalar_prefetch = 0 : i64, scratch_operands = 0 : i64, tpu.core_type = #tpu.core_type<tc>, window_params = [{transform_indices = @transform_0, window_bounds = array<i64: 256, 64>}, {pipeline_mode = #tpu.pipeline_mode<synchronous>, transform_indices = @transform_1, window_bounds = array<i64: 64, 128>}, {pipeline_mode = #tpu.pipeline_mode<synchronous>, transform_indices = @transform_2, window_bounds = array<i64: 1, 128>}, {pipeline_mode = #tpu.pipeline_mode<synchronous>, transform_indices = @transform_3, window_bounds = array<i64: 128, 128>}, {pipeline_mode = #tpu.pipeline_mode<synchronous>, transform_indices = @transform_4, window_bounds = array<i64: 1, 128>}, {pipeline_mode = #tpu.pipeline_mode<synchronous>, transform_indices = @transform_5, window_bounds = array<i64: 128, 128>}, {pipeline_mode = #tpu.pipeline_mode<synchronous>, transform_indices = @transform_6, window_bounds = array<i64: 1, 128>}, {transform_indices = @transform_7, window_bounds = array<i64: 256, 10>}]} {
    %c0 = arith.constant 0 : index
    %c0_0 = arith.constant 0 : index
    %0 = vector.load %arg1[%c0, %c0_0] : memref<256x64xf32, #tpu.memory_space<vmem>>, vector<256x64xf32>
    %1 = arith.truncf %0 : vector<256x64xf32> to vector<256x64xbf16>
    %c0_1 = arith.constant 0 : index
    %c0_2 = arith.constant 0 : index
    %2 = vector.load %arg2[%c0_1, %c0_2] : memref<64x128xbf16, #tpu.memory_space<vmem>>, vector<64x128xbf16>
    %cst = arith.constant dense<0.000000e+00> : vector<256x128xf32>
    %3 = tpu.matmul %1, %2, %cst {dimension_numbers = #tpu.dot_dimension_numbers<[1], [0], [0], [1], [0, 0, 1, 1], [], []>} : vector<256x64xbf16>, vector<64x128xbf16>, vector<256x128xf32> -> vector<256x128xf32>
    %c0_3 = arith.constant 0 : index
    %c0_4 = arith.constant 0 : index
    %4 = vector.load %arg3[%c0_3, %c0_4] : memref<1x128xf32, #tpu.memory_space<vmem>>, vector<1x128xf32>
    %5 = vector.broadcast %4 : vector<1x128xf32> to vector<256x128xf32>
    %6 = arith.addf %3, %5 : vector<256x128xf32>
    %cst_5 = arith.constant 0.000000e+00 : f32
    %7 = vector.broadcast %cst_5 : f32 to vector<256x128xf32>
    %8 = arith.maximumf %6, %7 : vector<256x128xf32>
    %9 = arith.truncf %8 : vector<256x128xf32> to vector<256x128xbf16>
    %c0_6 = arith.constant 0 : index
    %c0_7 = arith.constant 0 : index
    %10 = vector.load %arg4[%c0_6, %c0_7] : memref<128x128xbf16, #tpu.memory_space<vmem>>, vector<128x128xbf16>
    %cst_8 = arith.constant dense<0.000000e+00> : vector<256x128xf32>
    %11 = tpu.matmul %9, %10, %cst_8 {dimension_numbers = #tpu.dot_dimension_numbers<[1], [0], [0], [1], [0, 0, 1, 1], [], []>} : vector<256x128xbf16>, vector<128x128xbf16>, vector<256x128xf32> -> vector<256x128xf32>
    %c0_9 = arith.constant 0 : index
    %c0_10 = arith.constant 0 : index
    %12 = vector.load %arg5[%c0_9, %c0_10] : memref<1x128xf32, #tpu.memory_space<vmem>>, vector<1x128xf32>
    %13 = vector.broadcast %12 : vector<1x128xf32> to vector<256x128xf32>
    %14 = arith.addf %11, %13 : vector<256x128xf32>
    %cst_11 = arith.constant 0.000000e+00 : f32
    %15 = vector.broadcast %cst_11 : f32 to vector<256x128xf32>
    %16 = arith.maximumf %14, %15 : vector<256x128xf32>
    %17 = arith.truncf %16 : vector<256x128xf32> to vector<256x128xbf16>
    %c0_12 = arith.constant 0 : index
    %c0_13 = arith.constant 0 : index
    %18 = vector.load %arg6[%c0_12, %c0_13] : memref<128x128xbf16, #tpu.memory_space<vmem>>, vector<128x128xbf16>
    %cst_14 = arith.constant dense<0.000000e+00> : vector<256x128xf32>
    %19 = tpu.matmul %17, %18, %cst_14 {dimension_numbers = #tpu.dot_dimension_numbers<[1], [0], [0], [1], [0, 0, 1, 1], [], []>} : vector<256x128xbf16>, vector<128x128xbf16>, vector<256x128xf32> -> vector<256x128xf32>
    %c0_15 = arith.constant 0 : index
    %c0_16 = arith.constant 0 : index
    %20 = vector.load %arg7[%c0_15, %c0_16] : memref<1x128xf32, #tpu.memory_space<vmem>>, vector<1x128xf32>
    %21 = vector.broadcast %20 : vector<1x128xf32> to vector<256x128xf32>
    %22 = arith.addf %19, %21 : vector<256x128xf32>
    %cst_17 = arith.constant dense<0xFF800000> : vector<256xf32>
    %23 = vector.multi_reduction <maximumf>, %22, %cst_17 [1] : vector<256x128xf32> to vector<256xf32>
    %24 = vector.shape_cast %23 : vector<256xf32> to vector<256x1xf32>
    %25 = vector.broadcast %24 : vector<256x1xf32> to vector<256x128xf32>
    %26 = arith.subf %22, %25 : vector<256x128xf32>
    %27 = math.exp %26 : vector<256x128xf32>
    %cst_18 = arith.constant dense<0.000000e+00> : vector<256xf32>
    %28 = vector.multi_reduction <add>, %27, %cst_18 [1] : vector<256x128xf32> to vector<256xf32>
    %29 = vector.shape_cast %28 : vector<256xf32> to vector<256x1xf32>
    %30 = math.log %29 : vector<256x1xf32>
    %31 = vector.broadcast %30 : vector<256x1xf32> to vector<256x128xf32>
    %32 = arith.subf %26, %31 : vector<256x128xf32>
    %33 = vector.extract_strided_slice %32 {offsets = [0, 0], sizes = [256, 10], strides = [1, 1]} : vector<256x128xf32> to vector<256x10xf32>
    %c0_19 = arith.constant 0 : index
    %c0_20 = arith.constant 0 : index
    %34 = vector.load %arg8[%c0_19, %c0_20] : memref<256x10xf32, #tpu.memory_space<vmem>>, vector<256x10xf32>
    tpu.vector_store %arg8[%c0_19, %c0_20], %33 {strides = array<i32>} : memref<256x10xf32, #tpu.memory_space<vmem>>, vector<256x10xf32>,
    return
  }
  func.func @transform_0(%arg0: i32) -> (i32, i32) {
    %c0_i32 = arith.constant 0 : i32
    %c0_i32_0 = arith.constant 0 : i32
    return %arg0, %c0_i32 : i32, i32
  }
  func.func @transform_1(%arg0: i32) -> (i32, i32) {
    %c0_i32 = arith.constant 0 : i32
    %c0_i32_0 = arith.constant 0 : i32
    %c0_i32_1 = arith.constant 0 : i32
    return %c0_i32, %c0_i32_0 : i32, i32
  }
  func.func @transform_2(%arg0: i32) -> (i32, i32) {
    %c0_i32 = arith.constant 0 : i32
    %c0_i32_0 = arith.constant 0 : i32
    %c0_i32_1 = arith.constant 0 : i32
    return %c0_i32, %c0_i32_0 : i32, i32
  }
  func.func @transform_3(%arg0: i32) -> (i32, i32) {
    %c0_i32 = arith.constant 0 : i32
    %c0_i32_0 = arith.constant 0 : i32
    %c0_i32_1 = arith.constant 0 : i32
    return %c0_i32, %c0_i32_0 : i32, i32
  }
  func.func @transform_4(%arg0: i32) -> (i32, i32) {
    %c0_i32 = arith.constant 0 : i32
    %c0_i32_0 = arith.constant 0 : i32
    %c0_i32_1 = arith.constant 0 : i32
    return %c0_i32, %c0_i32_0 : i32, i32
  }
  func.func @transform_5(%arg0: i32) -> (i32, i32) {
    %c0_i32 = arith.constant 0 : i32
    %c0_i32_0 = arith.constant 0 : i32
    %c0_i32_1 = arith.constant 0 : i32
    return %c0_i32, %c0_i32_0 : i32, i32
  }
  func.func @transform_6(%arg0: i32) -> (i32, i32) {
    %c0_i32 = arith.constant 0 : i32
    %c0_i32_0 = arith.constant 0 : i32
    %c0_i32_1 = arith.constant 0 : i32
    return %c0_i32, %c0_i32_0 : i32, i32
  }
  func.func @transform_7(%arg0: i32) -> (i32, i32) {
    %c0_i32 = arith.constant 0 : i32
    %c0_i32_0 = arith.constant 0 : i32
    return %arg0, %c0_i32 : i32, i32
  }
}

</mosaic_0001>

<llo_original>
// kernel: tpu_custom_call.1
$region0: #{tpu_custom_call.1}
  #allocation0 [shape = 'u32[]', space=smem, size = 0x4, offset = 0x4, fixed_abs, tag = 'smem constant byte address 0x4 - core index']
  #allocation1 [shape = 'u32[144,128]{1,0:T(1,128)}', space=vmem, size = 0x12000, scoped, tag = 'internal scratch']
  %s0 = inlined_call_operand.vmem [shape: f32[512,64], index: 0, kind: input, shape index: {}]
  %s1 = inlined_call_operand.vmem [shape: bf16[64,128], index: 1, kind: input, shape index: {}]
  %s2 = inlined_call_operand.vmem [shape: f32[1,128], index: 2, kind: input, shape index: {}]
  %s3 = inlined_call_operand.vmem [shape: bf16[128,128], index: 3, kind: input, shape index: {}]
  %s4 = inlined_call_operand.vmem [shape: f32[1,128], index: 4, kind: input, shape index: {}]
  %s5 = inlined_call_operand.vmem [shape: bf16[128,128], index: 5, kind: input, shape index: {}]
  %s6 = inlined_call_operand.vmem [shape: f32[1,128], index: 6, kind: input, shape index: {}]
  %s7 = inlined_call_operand.vmem [shape: f32[512,10], index: 7, kind: output, shape index: {}]
  %s8 = sld [smem:[#allocation0]]
  $region61: #{tpu_custom_call.1} parent=0
    _
  %s10 = ssub.s32 1, %s8
  %s11 = scalar_select 0, %s10, %s8
  loop: start=0, step=1, limit=4
  $region2: #{tpu_custom_call.1} parent=0 // loop_pre_header
    _
  $region3: #{tpu_custom_call.1} parent=0 // loop_header
    %s13 = sphi 0, %s17
    %p14 = scmp.ge.s32.totalorder %s13, 4
    %s23 = sphi 0, %s25
    %s26 = sphi 0, %s23
    %s27 = sphi 0, %s26
    %s43 = sphi 0, %s27
    %s47 = sphi 0, %s47
    %s49 = sphi 0, %s47
    %s50 = sphi 0, %s49
    %s64 = sphi 0, %s50
    %s68 = sphi 0, %s68
    %s70 = sphi 0, %s68
    %s71 = sphi 0, %s70
    %s85 = sphi 0, %s71
    %s89 = sphi 0, %s89
    %s91 = sphi 0, %s89
    %s92 = sphi 0, %s91
    %s106 = sphi 0, %s92
    %s110 = sphi 0, %s110
    %s112 = sphi 0, %s110
    %s113 = sphi 0, %s112
    %s127 = sphi 0, %s113
    %s131 = sphi 0, %s131
    %s133 = sphi 0, %s131
    %s134 = sphi 0, %s133
    %s148 = sphi 0, %s134
    %s152 = sphi 0, %s152
    %s154 = sphi 0, %s152
    %s155 = sphi 0, %s154
    %s169 = sphi 0, %s155
    %s175 = sphi 0, %s177
    %s178 = sphi 0, %s175
    %s179 = sphi 0, %s178
    %s195 = sphi 0, %s179
  $region4: #{tpu_custom_call.1} parent=0 // loop_header_branch
    %16 = sbr.rel (%p14) target = $region8
  $region5: #{tpu_custom_call.1} parent=0 // loop_body
    %s18 = ssub.s32 %s13, 1
    %s19 = ssub.s32 %s13, 2
    %s20 = sadd.s32 %s13, 1
    %s21 = ssub.s32 %s13, %s20
    %p22 = scmp.eq.s32.totalorder %s21, 0
    %s24 = sadd.s32 %s23, 1
    %s25 = scalar_select %p22, %s23, %s24
    %p28 = pneg %p22
    %p29 = scmp.eq.s32.totalorder %s13, 1
    %p30 = por %p28, %p29
    %p31 = scmp.ne.s32.totalorder %s23, %s26
    %p32 = scmp.eq.s32.totalorder %s13, 0
    %p33 = por %p31, %p32
    %p34 = scmp.ne.s32.totalorder %s23, %s26
    %p35 = scmp.eq.s32.totalorder %s18, 1
    %p36 = por %p34, %p35
    %p37 = scmp.ne.s32.totalorder %s26, %s27
    %p38 = scmp.eq.s32.totalorder %s18, 0
    %p39 = por %p37, %p38
    %p40 = scmp.ne.s32.totalorder %s26, %s27
    %p41 = scmp.eq.s32.totalorder %s19, 1
    %p42 = por %p40, %p41
    %p44 = scmp.ne.s32.totalorder %s27, %s43
    %p45 = scmp.eq.s32.totalorder %s19, 0
    %p46 = por %p44, %p45
    %s48 = sadd.s32 %s47, 1
    %p51 = scmp.eq.s32.totalorder %s13, 1
    %p52 = scmp.ne.s32.totalorder %s47, %s49
    %p53 = scmp.eq.s32.totalorder %s13, 0
    %p54 = por %p52, %p53
    %p55 = scmp.ne.s32.totalorder %s47, %s49
    %p56 = scmp.eq.s32.totalorder %s18, 1
    %p57 = por %p55, %p56
    %p58 = scmp.ne.s32.totalorder %s49, %s50
    %p59 = scmp.eq.s32.totalorder %s18, 0
    %p60 = por %p58, %p59
    %p61 = scmp.ne.s32.totalorder %s49, %s50
    %p62 = scmp.eq.s32.totalorder %s19, 1
    %p63 = por %p61, %p62
    %p65 = scmp.ne.s32.totalorder %s50, %s64
    %p66 = scmp.eq.s32.totalorder %s19, 0
    %p67 = por %p65, %p66
    %s69 = sadd.s32 %s68, 1
    %p72 = scmp.eq.s32.totalorder %s13, 1
    %p73 = scmp.ne.s32.totalorder %s68, %s70
    %p74 = scmp.eq.s32.totalorder %s13, 0
    %p75 = por %p73, %p74
    %p76 = scmp.ne.s32.totalorder %s68, %s70
    %p77 = scmp.eq.s32.totalorder %s18, 1
    %p78 = por %p76, %p77
    %p79 = scmp.ne.s32.totalorder %s70, %s71
    %p80 = scmp.eq.s32.totalorder %s18, 0
    %p81 = por %p79, %p80
    %p82 = scmp.ne.s32.totalorder %s70, %s71
    %p83 = scmp.eq.s32.totalorder %s19, 1
    %p84 = por %p82, %p83
    %p86 = scmp.ne.s32.totalorder %s71, %s85
    %p87 = scmp.eq.s32.totalorder %s19, 0
    %p88 = por %p86, %p87
    %s90 = sadd.s32 %s89, 1
    %p93 = scmp.eq.s32.totalorder %s13, 1
    %p94 = scmp.ne.s32.totalorder %s89, %s91
    %p95 = scmp.eq.s32.totalorder %s13, 0
    %p96 = por %p94, %p95
    %p97 = scmp.ne.s32.totalorder %s89, %s91
    %p98 = scmp.eq.s32.totalorder %s18, 1
    %p99 = por %p97, %p98
    %p100 = scmp.ne.s32.totalorder %s91, %s92
    %p101 = scmp.eq.s32.totalorder %s18, 0
    %p102 = por %p100, %p101
    %p103 = scmp.ne.s32.totalorder %s91, %s92
    %p104 = scmp.eq.s32.totalorder %s19, 1
    %p105 = por %p103, %p104
    %p107 = scmp.ne.s32.totalorder %s92, %s106
    %p108 = scmp.eq.s32.totalorder %s19, 0
    %p109 = por %p107, %p108
    %s111 = sadd.s32 %s110, 1
    %p114 = scmp.eq.s32.totalorder %s13, 1
    %p115 = scmp.ne.s32.totalorder %s110, %s112
    %p116 = scmp.eq.s32.totalorder %s13, 0
    %p117 = por %p115, %p116
    %p118 = scmp.ne.s32.totalorder %s110, %s112
    %p119 = scmp.eq.s32.totalorder %s18, 1
    %p120 = por %p118, %p119
    %p121 = scmp.ne.s32.totalorder %s112, %s113
    %p122 = scmp.eq.s32.totalorder %s18, 0
    %p123 = por %p121, %p122
    %p124 = scmp.ne.s32.totalorder %s112, %s113
    %p125 = scmp.eq.s32.totalorder %s19, 1
    %p126 = por %p124, %p125
    %p128 = scmp.ne.s32.totalorder %s113, %s127
    %p129 = scmp.eq.s32.totalorder %s19, 0
    %p130 = por %p128, %p129
    %s132 = sadd.s32 %s131, 1
    %p135 = scmp.eq.s32.totalorder %s13, 1
    %p136 = scmp.ne.s32.totalorder %s131, %s133
    %p137 = scmp.eq.s32.totalorder %s13, 0
    %p138 = por %p136, %p137
    %p139 = scmp.ne.s32.totalorder %s131, %s133
    %p140 = scmp.eq.s32.totalorder %s18, 1
    %p141 = por %p139, %p140
    %p142 = scmp.ne.s32.totalorder %s133, %s134
    %p143 = scmp.eq.s32.totalorder %s18, 0
    %p144 = por %p142, %p143
    %p145 = scmp.ne.s32.totalorder %s133, %s134
    %p146 = scmp.eq.s32.totalorder %s19, 1
    %p147 = por %p145, %p146
    %p149 = scmp.ne.s32.totalorder %s134, %s148
    %p150 = scmp.eq.s32.totalorder %s19, 0
    %p151 = por %p149, %p150
    %s153 = sadd.s32 %s152, 1
    %p156 = scmp.eq.s32.totalorder %s13, 1
    %p157 = scmp.ne.s32.totalorder %s152, %s154
    %p158 = scmp.eq.s32.totalorder %s13, 0
    %p159 = por %p157, %p158
    %p160 = scmp.ne.s32.totalorder %s152, %s154
    %p161 = scmp.eq.s32.totalorder %s18, 1
    %p162 = por %p160, %p161
    %p163 = scmp.ne.s32.totalorder %s154, %s155
    %p164 = scmp.eq.s32.totalorder %s18, 0
    %p165 = por %p163, %p164
    %p166 = scmp.ne.s32.totalorder %s154, %s155
    %p167 = scmp.eq.s32.totalorder %s19, 1
    %p168 = por %p166, %p167
    %p170 = scmp.ne.s32.totalorder %s155, %s169
    %p171 = scmp.eq.s32.totalorder %s19, 0
    %p172 = por %p170, %p171
    %s173 = ssub.s32 %s13, %s20
    %p174 = scmp.eq.s32.totalorder %s173, 0
    %s176 = sadd.s32 %s175, 1
    %s177 = scalar_select %p174, %s175, %s176
    %p180 = pneg %p174
    %p181 = scmp.eq.s32.totalorder %s13, 1
    %p182 = por %p180, %p181
    %p183 = scmp.ne.s32.totalorder %s175, %s178
    %p184 = scmp.eq.s32.totalorder %s13, 0
    %p185 = por %p183, %p184
    %p186 = scmp.ne.s32.totalorder %s175, %s178
    %p187 = scmp.eq.s32.totalorder %s18, 1
    %p188 = por %p186, %p187
    %p189 = scmp.ne.s32.totalorder %s178, %s179
    %p190 = scmp.eq.s32.totalorder %s18, 0
    %p191 = por %p189, %p190
    %p192 = scmp.ne.s32.totalorder %s178, %s179
    %p193 = scmp.eq.s32.totalorder %s19, 1
    %p194 = por %p192, %p193
    %p196 = scmp.ne.s32.totalorder %s179, %s195
    %p197 = scmp.eq.s32.totalorder %s19, 0
    %p198 = por %p196, %p197
    %p199 = scmp.le.s32.totalorder 1, %s13
    %p200 = scmp.lt.s32.totalorder %s13, 3
    %p201 = pnand %p199, %p200
    %p202 = pneg %p201
    // Predicated region
    $region9: #{tpu_custom_call.1} parent=5 // pred_check
      _
    $region10: #{tpu_custom_call.1} parent=5 // pred_check_branch
      %204 = sbr.rel (%p201) target = $region12
    $region11: #{tpu_custom_call.1} parent=5 // pred_region
      %s205 = ssub.s32 %s13, 1
      // Predicated region
      $region13: #{tpu_custom_call.1} parent=11 // pred_check
        %p206 = pneg %p60
      $region14: #{tpu_custom_call.1} parent=11 // pred_check_branch
        %208 = sbr.rel (%p206) target = $region16
      $region15: #{tpu_custom_call.1} parent=11 // pred_region
        _
      $region16: #{tpu_custom_call.1} parent=11 // pred_fallthru
        _
      // Predicated region
      $region17: #{tpu_custom_call.1} parent=11 // pred_check
        %p209 = pneg %p81
      $region18: #{tpu_custom_call.1} parent=11 // pred_check_branch
        %211 = sbr.rel (%p209) target = $region20
      $region19: #{tpu_custom_call.1} parent=11 // pred_region
        _
      $region20: #{tpu_custom_call.1} parent=11 // pred_fallthru
        _
      // Predicated region
      $region21: #{tpu_custom_call.1} parent=11 // pred_check
        %p212 = pneg %p102
      $region22: #{tpu_custom_call.1} parent=11 // pred_check_branch
        %214 = sbr.rel (%p212) target = $region24
      $region23: #{tpu_custom_call.1} parent=11 // pred_region
        _
      $region24: #{tpu_custom_call.1} parent=11 // pred_fallthru
        _
      // Predicated region
      $region25: #{tpu_custom_call.1} parent=11 // pred_check
        %p215 = pneg %p123
      $region26: #{tpu_custom_call.1} parent=11 // pred_check_branch
        %217 = sbr.rel (%p215) target = $region28
      $region27: #{tpu_custom_call.1} parent=11 // pred_region
        _
      $region28: #{tpu_custom_call.1} parent=11 // pred_fallthru
        _
      // Predicated region
      $region29: #{tpu_custom_call.1} parent=11 // pred_check
        %p218 = pneg %p144
      $region30: #{tpu_custom_call.1} parent=11 // pred_check_branch
        %220 = sbr.rel (%p218) target = $region32
      $region31: #{tpu_custom_call.1} parent=11 // pred_region
        _
      $region32: #{tpu_custom_call.1} parent=11 // pred_fallthru
        _
      // Predicated region
      $region33: #{tpu_custom_call.1} parent=11 // pred_check
        %p221 = pneg %p165
      $region34: #{tpu_custom_call.1} parent=11 // pred_check_branch
        %223 = sbr.rel (%p221) target = $region36
      $region35: #{tpu_custom_call.1} parent=11 // pred_region
        _
      $region36: #{tpu_custom_call.1} parent=11 // pred_fallthru
        _
    $region12: #{tpu_custom_call.1} parent=5 // pred_fallthru
      _
    %p224 = scmp.lt.s32.totalorder %s13, 2
    // Predicated region
    $region37: #{tpu_custom_call.1} parent=5 // pred_check
      %p225 = pneg %p224
    $region38: #{tpu_custom_call.1} parent=5 // pred_check_branch
      %227 = sbr.rel (%p225) target = $region40
    $region39: #{tpu_custom_call.1} parent=5 // pred_region
      // Predicated region
      $region41: #{tpu_custom_call.1} parent=39 // pred_check
        %p228 = pneg %p33
      $region42: #{tpu_custom_call.1} parent=39 // pred_check_branch
        %230 = sbr.rel (%p228) target = $region44
      $region43: #{tpu_custom_call.1} parent=39 // pred_region
        %s231 = smul.u32 32, %s13
        %p232 = scmp.lt.s32.totalorder %s231, 63
        %s233 = scalar_select %p232, %s231, 63
        %s234 = smul.addr %s233, 8
        %s235 = scalar_lea.vmem %s0, %s234
        %s236 = smul.u32 32, %s13
      $region44: #{tpu_custom_call.1} parent=39 // pred_fallthru
        _
    $region40: #{tpu_custom_call.1} parent=5 // pred_fallthru
      _
    %p237 = scmp.le.s32.totalorder 1, %s13
    %p238 = scmp.lt.s32.totalorder %s13, 3
    %p239 = pnand %p237, %p238
    %p240 = pneg %p239
    // Predicated region
    $region45: #{tpu_custom_call.1} parent=5 // pred_check
      _
    $region46: #{tpu_custom_call.1} parent=5 // pred_check_branch
      %242 = sbr.rel (%p239) target = $region48
    $region47: #{tpu_custom_call.1} parent=5 // pred_region
      %s243 = ssub.s32 %s13, 1
      %s244 = smul.u32 32, %s18
      %p245 = scmp.lt.s32.totalorder %s244, 63
      %s246 = scalar_select %p245, %s244, 63
      %s247 = smul.addr %s246, 8
      %s248 = scalar_lea.vmem %s0, %s247
      %p249 = pneg %p39
      %p250 = pneg %p36
      %p251 = pneg %p60
      %p252 = pneg %p57
      %p253 = pneg %p81
      %p254 = pneg %p78
      %p255 = pneg %p102
      %p256 = pneg %p99
      %p257 = pneg %p123
      %p258 = pneg %p120
      %p259 = pneg %p144
      %p260 = pneg %p141
      %p261 = pneg %p165
      %p262 = pneg %p162
      %p263 = pneg %p191
      %p264 = pneg %p188
      %s265 = smul.u32 32, %s18
      %p266 = scmp.lt.s32.totalorder %s265, 63
      %s267 = scalar_select %p266, %s265, 63
      %s268 = smul.addr %s267, 8
      %s269 = scalar_lea.vmem %s7, %s268
      %s270 = smul.u32 32, %s18
      %p271 = scmp.lt.s32.totalorder %s270, 63
      %s272 = scalar_select %p271, %s270, 63
      %s273 = smul.addr %s272, 8
      %s274 = scalar_lea.vmem %s0, %s273
      %s275 = smul.u32 32, %s18
      %s276 = smul.u32 32, %s18
      %p277 = scmp.lt.s32.totalorder %s276, 63
      %s278 = scalar_select %p277, %s276, 63
      %s279 = smul.addr %s278, 8
      %s280 = scalar_lea.vmem %s7, %s279
      %s281 = smul.u32 32, %s18
      %v283 = vld [vmem:[%s274] sm:$0xff]
      %v284 = vld [vmem:[%s274 + $0x8] sm:$0xff]
      %v285 = vld [vmem:[%s274 + $0x10] sm:$0xff]
      %v286 = vld [vmem:[%s274 + $0x18] sm:$0xff]
      %v287 = vld [vmem:[%s274 + $0x20] sm:$0xff]
      %v288 = vld [vmem:[%s274 + $0x28] sm:$0xff]
      %v289 = vld [vmem:[%s274 + $0x30] sm:$0xff]
      %v290 = vld [vmem:[%s274 + $0x38] sm:$0xff]
      %v291 = vld [vmem:[%s274 + $0x40] sm:$0xff]
      %v292 = vld [vmem:[%s274 + $0x48] sm:$0xff]
      %v293 = vld [vmem:[%s274 + $0x50] sm:$0xff]
      %v294 = vld [vmem:[%s274 + $0x58] sm:$0xff]
      %v295 = vld [vmem:[%s274 + $0x60] sm:$0xff]
      %v296 = vld [vmem:[%s274 + $0x68] sm:$0xff]
      %v297 = vld [vmem:[%s274 + $0x70] sm:$0xff]
      %v298 = vld [vmem:[%s274 + $0x78] sm:$0xff]
      %v299 = vld [vmem:[%s274 + $0x80] sm:$0xff]
      %v300 = vld [vmem:[%s274 + $0x88] sm:$0xff]
      %v301 = vld [vmem:[%s274 + $0x90] sm:$0xff]
      %v302 = vld [vmem:[%s274 + $0x98] sm:$0xff]
      %v303 = vld [vmem:[%s274 + $0xa0] sm:$0xff]
      %v304 = vld [vmem:[%s274 + $0xa8] sm:$0xff]
      %v305 = vld [vmem:[%s274 + $0xb0] sm:$0xff]
      %v306 = vld [vmem:[%s274 + $0xb8] sm:$0xff]
      %v307 = vld [vmem:[%s274 + $0xc0] sm:$0xff]
      %v308 = vld [vmem:[%s274 + $0xc8] sm:$0xff]
      %v309 = vld [vmem:[%s274 + $0xd0] sm:$0xff]
      %v310 = vld [vmem:[%s274 + $0xd8] sm:$0xff]
      %v311 = vld [vmem:[%s274 + $0xe0] sm:$0xff]
      %v312 = vld [vmem:[%s274 + $0xe8] sm:$0xff]
      %v313 = vld [vmem:[%s274 + $0xf0] sm:$0xff]
      %v314 = vld [vmem:[%s274 + $0xf8] sm:$0xff]
      %v315 = vpack.c.bf16 %v284, %v283
      %v316 = vpack.c.bf16 %v286, %v285
      %v317 = vpack.c.bf16 %v288, %v287
      %v318 = vpack.c.bf16 %v290, %v289
      %v319 = vpack.c.bf16 %v292, %v291
      %v320 = vpack.c.bf16 %v294, %v293
      %v321 = vpack.c.bf16 %v296, %v295
      %v322 = vpack.c.bf16 %v298, %v297
      %v323 = vpack.c.bf16 %v300, %v299
      %v324 = vpack.c.bf16 %v302, %v301
      %v325 = vpack.c.bf16 %v304, %v303
      %v326 = vpack.c.bf16 %v306, %v305
      %v327 = vpack.c.bf16 %v308, %v307
      %v328 = vpack.c.bf16 %v310, %v309
      %v329 = vpack.c.bf16 %v312, %v311
      %v330 = vpack.c.bf16 %v314, %v313
      %v331 = vld [vmem:[%s1] sm:$0xf]
      %v332 = vld [vmem:[%s1 + $0x4] sm:$0xf]
      %v333 = vld [vmem:[%s1 + $0x8] sm:$0xf]
      %v334 = vld [vmem:[%s1 + $0xc] sm:$0xf]
      %v335 = vld [vmem:[%s1 + $0x10] sm:$0xf]
      %v336 = vld [vmem:[%s1 + $0x14] sm:$0xf]
      %v337 = vld [vmem:[%s1 + $0x18] sm:$0xf]
      %v338 = vld [vmem:[%s1 + $0x1c] sm:$0xf]
      %v339 = vld [vmem:[%s2] sm:$0x1]
      %v341 = vlaneseq
      %v342 = vshrl.u32 %v341, 7
      %v343 = vsub.s32 0, %v342
      %v344 = vrot.slane %v339, %v343
      %v354 = vunpack.c.l.b16 %v331
      %v355 = vunpack.c.l.b16 %v332
      %v356 = vunpack.c.l.b16 %v333
      %v357 = vunpack.c.l.b16 %v334
      %v358 = vunpack.c.l.b16 %v335
      %v359 = vunpack.c.l.b16 %v336
      %v360 = vunpack.c.l.b16 %v337
      %v361 = vunpack.c.l.b16 %v338
      %v362 = vpack.c.b16 %v355, %v354
      %v363 = vpack.c.b16 %v357, %v356
      %v364 = vpack.c.b16 %v359, %v358
      %v365 = vpack.c.b16 %v361, %v360
      %vm370 = vcmask 523264
      %v372 = vsel %vm370, %v315, 0
      %v375 = vsel %vm370, %v316, 0
      %v378 = vsel %vm370, %v317, 0
      %v381 = vsel %vm370, %v318, 0
      %v384 = vsel %vm370, %v319, 0
      %v387 = vsel %vm370, %v320, 0
      %v390 = vsel %vm370, %v321, 0
      %v393 = vsel %vm370, %v322, 0
      %v396 = vsel %vm370, %v323, 0
      %v399 = vsel %vm370, %v324, 0
      %v402 = vsel %vm370, %v325, 0
      %v405 = vsel %vm370, %v326, 0
      %v408 = vsel %vm370, %v327, 0
      %v411 = vsel %vm370, %v328, 0
      %v414 = vsel %vm370, %v329, 0
      %v417 = vsel %vm370, %v330, 0
      %419 = vmatprep.subr.bf16.mxu0 0
      %420 = vmatpush1.bf16.msra.mxu0 %v362
      %421 = vmatprep.subr.bf16.mxu0 0
      %422 = vmatpush1.bf16.msra.mxu0 %v363
      %423 = vmatprep.subr.bf16.mxu0 0
      %424 = vmatpush1.bf16.msra.mxu0 %v364
      %425 = vmatprep.subr.bf16.mxu0 0
      %426 = vmatpush1.bf16.msra.mxu0 %v365
      %427 = vmatprep.subr.bf16.mxu0 0
      %428 = vmatpush1.bf16.msra.mxu0 0
      %429 = vmatprep.subr.bf16.mxu0 0
      %430 = vmatpush1.bf16.msra.mxu0 0
      %431 = vmatprep.subr.bf16.mxu0 0
      %432 = vmatpush1.bf16.msra.mxu0 0
      %433 = vmatprep.subr.bf16.mxu0 0
      %434 = vmatpush1.bf16.msra.mxu0 0
      %435 = vmatprep.subr.bf16.mxu0 0
      %436 = vmatpush1.bf16.msra.mxu0 0
      %437 = vmatprep.subr.bf16.mxu0 0
      %438 = vmatpush1.bf16.msra.mxu0 0
      %439 = vmatprep.subr.bf16.mxu0 0
      %440 = vmatpush1.bf16.msra.mxu0 0
      %441 = vmatprep.subr.bf16.mxu0 0
      %442 = vmatpush1.bf16.msra.mxu0 0
      %443 = vmatprep.subr.bf16.mxu0 0
      %444 = vmatpush1.bf16.msra.mxu0 0
      %445 = vmatprep.subr.bf16.mxu0 0
      %446 = vmatpush1.bf16.msra.mxu0 0
      %447 = vmatprep.subr.bf16.mxu0 0
      %448 = vmatpush1.bf16.msra.mxu0 0
      %449 = vmatprep.subr.bf16.mxu0 0
      %450 = vmatpush1.bf16.msra.mxu0 0
      %451 = vmatprep.mubr.bf16.mxu0 0
      %452 = vmatmul.mubr.bf16.gmra.mrb[0].mxu0 %v372
      %v453 = vpop.f32.mrb[0].mxu0
      %v454 = vadd.f32 %v344, %v453
      %v455 = vpop.f32.mrb[0].mxu0
      %v456 = vpop.f32.mrb[0].mxu0
      %v457 = vadd.f32 %v344, %v456
      %v458 = vpop.f32.mrb[0].mxu0
      %459 = vmatprep.mubr.bf16.mxu0 0
      %460 = vmatmul.mubr.bf16.gmra.mrb[0].mxu0 %v375
      %v461 = vpop.f32.mrb[0].mxu0
      %v462 = vadd.f32 %v344, %v461
      %v463 = vpop.f32.mrb[0].mxu0
      %v464 = vpop.f32.mrb[0].mxu0
      %v465 = vadd.f32 %v344, %v464
      %v466 = vpop.f32.mrb[0].mxu0
      %467 = vmatprep.mubr.bf16.mxu0 0
      %468 = vmatmul.mubr.bf16.gmra.mrb[0].mxu0 %v378
      %v469 = vpop.f32.mrb[0].mxu0
      %v470 = vadd.f32 %v344, %v469
      %v471 = vpop.f32.mrb[0].mxu0
      %v472 = vpop.f32.mrb[0].mxu0
      %v473 = vadd.f32 %v344, %v472
      %v474 = vpop.f32.mrb[0].mxu0
      %475 = vmatprep.mubr.bf16.mxu0 0
      %476 = vmatmul.mubr.bf16.gmra.mrb[0].mxu0 %v381
      %v477 = vpop.f32.mrb[0].mxu0
      %v478 = vadd.f32 %v344, %v477
      %v479 = vpop.f32.mrb[0].mxu0
      %v480 = vpop.f32.mrb[0].mxu0
      %v481 = vadd.f32 %v344, %v480
      %v482 = vpop.f32.mrb[0].mxu0
      %483 = vmatprep.mubr.bf16.mxu0 0
      %484 = vmatmul.mubr.bf16.gmra.mrb[0].mxu0 %v384
      %v485 = vpop.f32.mrb[0].mxu0
      %v486 = vadd.f32 %v344, %v485
      %v487 = vpop.f32.mrb[0].mxu0
      %v488 = vpop.f32.mrb[0].mxu0
      %v489 = vadd.f32 %v344, %v488
      %v490 = vpop.f32.mrb[0].mxu0
      %491 = vmatprep.mubr.bf16.mxu0 0
      %492 = vmatmul.mubr.bf16.gmra.mrb[0].mxu0 %v387
      %v493 = vpop.f32.mrb[0].mxu0
      %v494 = vadd.f32 %v344, %v493
      %v495 = vpop.f32.mrb[0].mxu0
      %v496 = vpop.f32.mrb[0].mxu0
      %v497 = vadd.f32 %v344, %v496
      %v498 = vpop.f32.mrb[0].mxu0
      %499 = vmatprep.mubr.bf16.mxu0 0
      %500 = vmatmul.mubr.bf16.gmra.mrb[0].mxu0 %v390
      %v501 = vpop.f32.mrb[0].mxu0
      %v502 = vadd.f32 %v344, %v501
      %v503 = vpop.f32.mrb[0].mxu0
      %v504 = vpop.f32.mrb[0].mxu0
      %v505 = vadd.f32 %v344, %v504
      %v506 = vpop.f32.mrb[0].mxu0
      %507 = vmatprep.mubr.bf16.mxu0 0
      %508 = vmatmul.mubr.bf16.gmra.mrb[0].mxu0 %v393
      %v509 = vpop.f32.mrb[0].mxu0
      %v510 = vadd.f32 %v344, %v509
      %v511 = vpop.f32.mrb[0].mxu0
      %v512 = vpop.f32.mrb[0].mxu0
      %v513 = vadd.f32 %v344, %v512
      %v514 = vpop.f32.mrb[0].mxu0
      %515 = vmatprep.mubr.bf16.mxu0 0
      %516 = vmatmul.mubr.bf16.gmra.mrb[0].mxu0 %v396
      %v517 = vpop.f32.mrb[0].mxu0
      %v518 = vadd.f32 %v344, %v517
      %v519 = vpop.f32.mrb[0].mxu0
      %v520 = vpop.f32.mrb[0].mxu0
      %v521 = vadd.f32 %v344, %v520
      %v522 = vpop.f32.mrb[0].mxu0
      %523 = vmatprep.mubr.bf16.mxu0 0
      %524 = vmatmul.mubr.bf16.gmra.mrb[0].mxu0 %v399
      %v525 = vpop.f32.mrb[0].mxu0
      %v526 = vadd.f32 %v344, %v525
      %v527 = vpop.f32.mrb[0].mxu0
      %v528 = vpop.f32.mrb[0].mxu0
      %v529 = vadd.f32 %v344, %v528
      %v530 = vpop.f32.mrb[0].mxu0
      %531 = vmatprep.mubr.bf16.mxu0 0
      %532 = vmatmul.mubr.bf16.gmra.mrb[0].mxu0 %v402
      %v533 = vpop.f32.mrb[0].mxu0
      %v534 = vadd.f32 %v344, %v533
      %v535 = vpop.f32.mrb[0].mxu0
      %v536 = vpop.f32.mrb[0].mxu0
      %v537 = vadd.f32 %v344, %v536
      %v538 = vpop.f32.mrb[0].mxu0
      %539 = vmatprep.mubr.bf16.mxu0 0
      %540 = vmatmul.mubr.bf16.gmra.mrb[0].mxu0 %v405
      %v541 = vpop.f32.mrb[0].mxu0
      %v542 = vadd.f32 %v344, %v541
      %v543 = vpop.f32.mrb[0].mxu0
      %v544 = vpop.f32.mrb[0].mxu0
      %v545 = vadd.f32 %v344, %v544
      %v546 = vpop.f32.mrb[0].mxu0
      %547 = vmatprep.mubr.bf16.mxu0 0
      %548 = vmatmul.mubr.bf16.gmra.mrb[0].mxu0 %v408
      %v549 = vpop.f32.mrb[0].mxu0
      %v550 = vadd.f32 %v344, %v549
      %v551 = vpop.f32.mrb[0].mxu0
      %v552 = vpop.f32.mrb[0].mxu0
      %v553 = vadd.f32 %v344, %v552
      %v554 = vpop.f32.mrb[0].mxu0
      %555 = vmatprep.mubr.bf16.mxu0 0
      %556 = vmatmul.mubr.bf16.gmra.mrb[0].mxu0 %v411
      %v557 = vpop.f32.mrb[0].mxu0
      %v558 = vadd.f32 %v344, %v557
      %v559 = vpop.f32.mrb[0].mxu0
      %v560 = vpop.f32.mrb[0].mxu0
      %v561 = vadd.f32 %v344, %v560
      %v562 = vpop.f32.mrb[0].mxu0
      %563 = vmatprep.mubr.bf16.mxu0 0
      %564 = vmatmul.mubr.bf16.gmra.mrb[0].mxu0 %v414
      %v565 = vpop.f32.mrb[0].mxu0
      %v566 = vadd.f32 %v344, %v565
      %v567 = vpop.f32.mrb[0].mxu0
      %v568 = vpop.f32.mrb[0].mxu0
      %v569 = vadd.f32 %v344, %v568
      %v570 = vpop.f32.mrb[0].mxu0
      %571 = vmatprep.mubr.bf16.mxu0 0
      %572 = vmatmul.mubr.bf16.gmra.mrb[0].mxu0 %v417
      %v573 = vpop.f32.mrb[0].mxu0
      %v574 = vadd.f32 %v344, %v573
      %v575 = vpop.f32.mrb[0].mxu0
      %v576 = vpop.f32.mrb[0].mxu0
      %v577 = vadd.f32 %v344, %v576
      %v578 = vpop.f32.mrb[0].mxu0
      %579 = vdwg.mxu0
      %v580 = vmax.f32 %v454, 0.0
      %v581 = vmax.f32 %v457, 0.0
      %v582 = vmax.f32 %v462, 0.0
      %v583 = vmax.f32 %v465, 0.0
      %v584 = vmax.f32 %v470, 0.0
      %v585 = vmax.f32 %v473, 0.0
      %v586 = vmax.f32 %v478, 0.0
      %v587 = vmax.f32 %v481, 0.0
      %v588 = vmax.f32 %v486, 0.0
      %v589 = vmax.f32 %v489, 0.0
      %v590 = vmax.f32 %v494, 0.0
      %v591 = vmax.f32 %v497, 0.0
      %v592 = vmax.f32 %v502, 0.0
      %v593 = vmax.f32 %v505, 0.0
      %v594 = vmax.f32 %v510, 0.0
      %v595 = vmax.f32 %v513, 0.0
      %v596 = vmax.f32 %v518, 0.0
      %v597 = vmax.f32 %v521, 0.0
      %v598 = vmax.f32 %v526, 0.0
      %v599 = vmax.f32 %v529, 0.0
      %v600 = vmax.f32 %v534, 0.0
      %v601 = vmax.f32 %v537, 0.0
      %v602 = vmax.f32 %v542, 0.0
      %v603 = vmax.f32 %v545, 0.0
      %v604 = vmax.f32 %v550, 0.0
      %v605 = vmax.f32 %v553, 0.0
      %v606 = vmax.f32 %v558, 0.0
      %v607 = vmax.f32 %v561, 0.0
      %v608 = vmax.f32 %v566, 0.0
      %v609 = vmax.f32 %v569, 0.0
      %v610 = vmax.f32 %v574, 0.0
      %v611 = vmax.f32 %v577, 0.0
      %v612 = vpack.c.bf16 %v581, %v580
      %v613 = vpack.c.bf16 %v583, %v582
      %v614 = vpack.c.bf16 %v585, %v584
      %v615 = vpack.c.bf16 %v587, %v586
      %v616 = vpack.c.bf16 %v589, %v588
      %v617 = vpack.c.bf16 %v591, %v590
      %v618 = vpack.c.bf16 %v593, %v592
      %v619 = vpack.c.bf16 %v595, %v594
      %v620 = vpack.c.bf16 %v597, %v596
      %v621 = vpack.c.bf16 %v599, %v598
      %v622 = vpack.c.bf16 %v601, %v600
      %v623 = vpack.c.bf16 %v603, %v602
      %v624 = vpack.c.bf16 %v605, %v604
      %v625 = vpack.c.bf16 %v607, %v606
      %v626 = vpack.c.bf16 %v609, %v608
      %v627 = vpack.c.bf16 %v611, %v610
      %v628 = vld [vmem:[%s3] sm:$0xf]
      %v629 = vld [vmem:[%s3 + $0x4] sm:$0xf]
      %v630 = vld [vmem:[%s3 + $0x8] sm:$0xf]
      %v631 = vld [vmem:[%s3 + $0xc] sm:$0xf]
      %v632 = vld [vmem:[%s3 + $0x10] sm:$0xf]
      %v633 = vld [vmem:[%s3 + $0x14] sm:$0xf]
      %v634 = vld [vmem:[%s3 + $0x18] sm:$0xf]
      %v635 = vld [vmem:[%s3 + $0x1c] sm:$0xf]
      %v636 = vld [vmem:[%s3 + $0x20] sm:$0xf]
      %v637 = vld [vmem:[%s3 + $0x24] sm:$0xf]
      %v638 = vld [vmem:[%s3 + $0x28] sm:$0xf]
      %v639 = vld [vmem:[%s3 + $0x2c] sm:$0xf]
      %v640 = vld [vmem:[%s3 + $0x30] sm:$0xf]
      %v641 = vld [vmem:[%s3 + $0x34] sm:$0xf]
      %v642 = vld [vmem:[%s3 + $0x38] sm:$0xf]
      %v643 = vld [vmem:[%s3 + $0x3c] sm:$0xf]
      %v644 = vld [vmem:[%s4] sm:$0x1]
      %v646 = vlaneseq
      %v647 = vshrl.u32 %v646, 7
      %v648 = vsub.s32 0, %v647
      %v649 = vrot.slane %v644, %v648
      %v667 = vunpack.c.l.b16 %v628
      %v668 = vunpack.c.l.b16 %v629
      %v669 = vunpack.c.l.b16 %v630
      %v670 = vunpack.c.l.b16 %v631
      %v671 = vunpack.c.l.b16 %v632
      %v672 = vunpack.c.l.b16 %v633
      %v673 = vunpack.c.l.b16 %v634
      %v674 = vunpack.c.l.b16 %v635
      %v675 = vunpack.c.l.b16 %v636
      %v676 = vunpack.c.l.b16 %v637
      %v677 = vunpack.c.l.b16 %v638
      %v678 = vunpack.c.l.b16 %v639
      %v679 = vunpack.c.l.b16 %v640
      %v680 = vunpack.c.l.b16 %v641
      %v681 = vunpack.c.l.b16 %v642
      %v682 = vunpack.c.l.b16 %v643
      %v683 = vpack.c.b16 %v668, %v667
      %v684 = vpack.c.b16 %v670, %v669
      %v685 = vpack.c.b16 %v672, %v671
      %v686 = vpack.c.b16 %v674, %v673
      %v687 = vpack.c.b16 %v676, %v675
      %v688 = vpack.c.b16 %v678, %v677
      %v689 = vpack.c.b16 %v680, %v679
      %v690 = vpack.c.b16 %v682, %v681
      %699 = vmatprep.subr.bf16.mxu0 0
      %700 = vmatpush1.bf16.msra.mxu0 %v683
      %701 = vmatprep.subr.bf16.mxu0 0
      %702 = vmatpush1.bf16.msra.mxu0 %v684
      %703 = vmatprep.subr.bf16.mxu0 0
      %704 = vmatpush1.bf16.msra.mxu0 %v685
      %705 = vmatprep.subr.bf16.mxu0 0
      %706 = vmatpush1.bf16.msra.mxu0 %v686
      %707 = vmatprep.subr.bf16.mxu0 0
      %708 = vmatpush1.bf16.msra.mxu0 %v687
      %709 = vmatprep.subr.bf16.mxu0 0
      %710 = vmatpush1.bf16.msra.mxu0 %v688
      %711 = vmatprep.subr.bf16.mxu0 0
      %712 = vmatpush1.bf16.msra.mxu0 %v689
      %713 = vmatprep.subr.bf16.mxu0 0
      %714 = vmatpush1.bf16.msra.mxu0 %v690
      %715 = vmatprep.subr.bf16.mxu0 0
      %716 = vmatpush1.bf16.msra.mxu0 0
      %717 = vmatprep.subr.bf16.mxu0 0
      %718 = vmatpush1.bf16.msra.mxu0 0
      %719 = vmatprep.subr.bf16.mxu0 0
      %720 = vmatpush1.bf16.msra.mxu0 0
      %721 = vmatprep.subr.bf16.mxu0 0
      %722 = vmatpush1.bf16.msra.mxu0 0
      %723 = vmatprep.subr.bf16.mxu0 0
      %724 = vmatpush1.bf16.msra.mxu0 0
      %725 = vmatprep.subr.bf16.mxu0 0
      %726 = vmatpush1.bf16.msra.mxu0 0
      %727 = vmatprep.subr.bf16.mxu0 0
      %728 = vmatpush1.bf16.msra.mxu0 0
      %729 = vmatprep.subr.bf16.mxu0 0
      %730 = vmatpush1.bf16.msra.mxu0 0
      %731 = vmatprep.mubr.bf16.mxu0 0
      %732 = vmatmul.mubr.bf16.gmra.mrb[0].mxu0 %v612
      %v733 = vpop.f32.mrb[0].mxu0
      %v734 = vadd.f32 %v649, %v733
      %v735 = vpop.f32.mrb[0].mxu0
      %v736 = vpop.f32.mrb[0].mxu0
      %v737 = vadd.f32 %v649, %v736
      %v738 = vpop.f32.mrb[0].mxu0
      %739 = vmatprep.mubr.bf16.mxu0 0
      %740 = vmatmul.mubr.bf16.gmra.mrb[0].mxu0 %v613
      %v741 = vpop.f32.mrb[0].mxu0
      %v742 = vadd.f32 %v649, %v741
      %v743 = vpop.f32.mrb[0].mxu0
      %v744 = vpop.f32.mrb[0].mxu0
      %v745 = vadd.f32 %v649, %v744
      %v746 = vpop.f32.mrb[0].mxu0
      %747 = vmatprep.mubr.bf16.mxu0 0
      %748 = vmatmul.mubr.bf16.gmra.mrb[0].mxu0 %v614
      %v749 = vpop.f32.mrb[0].mxu0
      %v750 = vadd.f32 %v649, %v749
      %v751 = vpop.f32.mrb[0].mxu0
      %v752 = vpop.f32.mrb[0].mxu0
      %v753 = vadd.f32 %v649, %v752
      %v754 = vpop.f32.mrb[0].mxu0
      %755 = vmatprep.mubr.bf16.mxu0 0
      %756 = vmatmul.mubr.bf16.gmra.mrb[0].mxu0 %v615
      %v757 = vpop.f32.mrb[0].mxu0
      %v758 = vadd.f32 %v649, %v757
      %v759 = vpop.f32.mrb[0].mxu0
      %v760 = vpop.f32.mrb[0].mxu0
      %v761 = vadd.f32 %v649, %v760
      %v762 = vpop.f32.mrb[0].mxu0
      %763 = vmatprep.mubr.bf16.mxu0 0
      %764 = vmatmul.mubr.bf16.gmra.mrb[0].mxu0 %v616
      %v765 = vpop.f32.mrb[0].mxu0
      %v766 = vadd.f32 %v649, %v765
      %v767 = vpop.f32.mrb[0].mxu0
      %v768 = vpop.f32.mrb[0].mxu0
      %v769 = vadd.f32 %v649, %v768
      %v770 = vpop.f32.mrb[0].mxu0
      %771 = vmatprep.mubr.bf16.mxu0 0
      %772 = vmatmul.mubr.bf16.gmra.mrb[0].mxu0 %v617
      %v773 = vpop.f32.mrb[0].mxu0
      %v774 = vadd.f32 %v649, %v773
      %v775 = vpop.f32.mrb[0].mxu0
      %v776 = vpop.f32.mrb[0].mxu0
      %v777 = vadd.f32 %v649, %v776
      %v778 = vpop.f32.mrb[0].mxu0
      %779 = vmatprep.mubr.bf16.mxu0 0
      %780 = vmatmul.mubr.bf16.gmra.mrb[0].mxu0 %v618
      %v781 = vpop.f32.mrb[0].mxu0
      %v782 = vadd.f32 %v649, %v781
      %v783 = vpop.f32.mrb[0].mxu0
      %v784 = vpop.f32.mrb[0].mxu0
      %v785 = vadd.f32 %v649, %v784
      %v786 = vpop.f32.mrb[0].mxu0
      %787 = vmatprep.mubr.bf16.mxu0 0
      %788 = vmatmul.mubr.bf16.gmra.mrb[0].mxu0 %v619
      %v789 = vpop.f32.mrb[0].mxu0
      %v790 = vadd.f32 %v649, %v789
      %v791 = vpop.f32.mrb[0].mxu0
      %v792 = vpop.f32.mrb[0].mxu0
      %v793 = vadd.f32 %v649, %v792
      %v794 = vpop.f32.mrb[0].mxu0
      %795 = vmatprep.mubr.bf16.mxu0 0
      %796 = vmatmul.mubr.bf16.gmra.mrb[0].mxu0 %v620
      %v797 = vpop.f32.mrb[0].mxu0
      %v798 = vadd.f32 %v649, %v797
      %v799 = vpop.f32.mrb[0].mxu0
      %v800 = vpop.f32.mrb[0].mxu0
      %v801 = vadd.f32 %v649, %v800
      %v802 = vpop.f32.mrb[0].mxu0
      %803 = vmatprep.mubr.bf16.mxu0 0
      %804 = vmatmul.mubr.bf16.gmra.mrb[0].mxu0 %v621
      %v805 = vpop.f32.mrb[0].mxu0
      %v806 = vadd.f32 %v649, %v805
      %v807 = vpop.f32.mrb[0].mxu0
      %v808 = vpop.f32.mrb[0].mxu0
      %v809 = vadd.f32 %v649, %v808
      %v810 = vpop.f32.mrb[0].mxu0
      %811 = vmatprep.mubr.bf16.mxu0 0
      %812 = vmatmul.mubr.bf16.gmra.mrb[0].mxu0 %v622
      %v813 = vpop.f32.mrb[0].mxu0
      %v814 = vadd.f32 %v649, %v813
      %v815 = vpop.f32.mrb[0].mxu0
      %v816 = vpop.f32.mrb[0].mxu0
      %v817 = vadd.f32 %v649, %v816
      %v818 = vpop.f32.mrb[0].mxu0
      %819 = vmatprep.mubr.bf16.mxu0 0
      %820 = vmatmul.mubr.bf16.gmra.mrb[0].mxu0 %v623
      %v821 = vpop.f32.mrb[0].mxu0
      %v822 = vadd.f32 %v649, %v821
      %v823 = vpop.f32.mrb[0].mxu0
      %v824 = vpop.f32.mrb[0].mxu0
      %v825 = vadd.f32 %v649, %v824
      %v826 = vpop.f32.mrb[0].mxu0
      %827 = vmatprep.mubr.bf16.mxu0 0
      %828 = vmatmul.mubr.bf16.gmra.mrb[0].mxu0 %v624
      %v829 = vpop.f32.mrb[0].mxu0
      %v830 = vadd.f32 %v649, %v829
      %v831 = vpop.f32.mrb[0].mxu0
      %v832 = vpop.f32.mrb[0].mxu0
      %v833 = vadd.f32 %v649, %v832
      %v834 = vpop.f32.mrb[0].mxu0
      %835 = vmatprep.mubr.bf16.mxu0 0
      %836 = vmatmul.mubr.bf16.gmra.mrb[0].mxu0 %v625
      %v837 = vpop.f32.mrb[0].mxu0
      %v838 = vadd.f32 %v649, %v837
      %v839 = vpop.f32.mrb[0].mxu0
      %v840 = vpop.f32.mrb[0].mxu0
      %v841 = vadd.f32 %v649, %v840
      %v842 = vpop.f32.mrb[0].mxu0
      %843 = vmatprep.mubr.bf16.mxu0 0
      %844 = vmatmul.mubr.bf16.gmra.mrb[0].mxu0 %v626
      %v845 = vpop.f32.mrb[0].mxu0
      %v846 = vadd.f32 %v649, %v845
      %v847 = vpop.f32.mrb[0].mxu0
      %v848 = vpop.f32.mrb[0].mxu0
      %v849 = vadd.f32 %v649, %v848
      %v850 = vpop.f32.mrb[0].mxu0
      %851 = vmatprep.mubr.bf16.mxu0 0
      %852 = vmatmul.mubr.bf16.gmra.mrb[0].mxu0 %v627
      %v853 = vpop.f32.mrb[0].mxu0
      %v854 = vadd.f32 %v649, %v853
      %v855 = vpop.f32.mrb[0].mxu0
      %v856 = vpop.f32.mrb[0].mxu0
      %v857 = vadd.f32 %v649, %v856
      %v858 = vpop.f32.mrb[0].mxu0
      %859 = vdwg.mxu0
      %v860 = vmax.f32 %v734, 0.0
      %v861 = vmax.f32 %v737, 0.0
      %v862 = vmax.f32 %v742, 0.0
      %v863 = vmax.f32 %v745, 0.0
      %v864 = vmax.f32 %v750, 0.0
      %v865 = vmax.f32 %v753, 0.0
      %v866 = vmax.f32 %v758, 0.0
      %v867 = vmax.f32 %v761, 0.0
      %v868 = vmax.f32 %v766, 0.0
      %v869 = vmax.f32 %v769, 0.0
      %v870 = vmax.f32 %v774, 0.0
      %v871 = vmax.f32 %v777, 0.0
      %v872 = vmax.f32 %v782, 0.0
      %v873 = vmax.f32 %v785, 0.0
      %v874 = vmax.f32 %v790, 0.0
      %v875 = vmax.f32 %v793, 0.0
      %v876 = vmax.f32 %v798, 0.0
      %v877 = vmax.f32 %v801, 0.0
      %v878 = vmax.f32 %v806, 0.0
      %v879 = vmax.f32 %v809, 0.0
      %v880 = vmax.f32 %v814, 0.0
      %v881 = vmax.f32 %v817, 0.0
      %v882 = vmax.f32 %v822, 0.0
      %v883 = vmax.f32 %v825, 0.0
      %v884 = vmax.f32 %v830, 0.0
      %v885 = vmax.f32 %v833, 0.0
      %v886 = vmax.f32 %v838, 0.0
      %v887 = vmax.f32 %v841, 0.0
      %v888 = vmax.f32 %v846, 0.0
      %v889 = vmax.f32 %v849, 0.0
      %v890 = vmax.f32 %v854, 0.0
      %v891 = vmax.f32 %v857, 0.0
      %v892 = vpack.c.bf16 %v861, %v860
      %v893 = vpack.c.bf16 %v863, %v862
      %v894 = vpack.c.bf16 %v865, %v864
      %v895 = vpack.c.bf16 %v867, %v866
      %v896 = vpack.c.bf16 %v869, %v868
      %v897 = vpack.c.bf16 %v871, %v870
      %v898 = vpack.c.bf16 %v873, %v872
      %v899 = vpack.c.bf16 %v875, %v874
      %v900 = vpack.c.bf16 %v877, %v876
      %v901 = vpack.c.bf16 %v879, %v878
      %v902 = vpack.c.bf16 %v881, %v880
      %v903 = vpack.c.bf16 %v883, %v882
      %v904 = vpack.c.bf16 %v885, %v884
      %v905 = vpack.c.bf16 %v887, %v886
      %v906 = vpack.c.bf16 %v889, %v888
      %v907 = vpack.c.bf16 %v891, %v890
      %v908 = vld [vmem:[%s5] sm:$0xf]
      %v909 = vld [vmem:[%s5 + $0x4] sm:$0xf]
      %v910 = vld [vmem:[%s5 + $0x8] sm:$0xf]
      %v911 = vld [vmem:[%s5 + $0xc] sm:$0xf]
      %v912 = vld [vmem:[%s5 + $0x10] sm:$0xf]
      %v913 = vld [vmem:[%s5 + $0x14] sm:$0xf]
      %v914 = vld [vmem:[%s5 + $0x18] sm:$0xf]
      %v915 = vld [vmem:[%s5 + $0x1c] sm:$0xf]
      %v916 = vld [vmem:[%s5 + $0x20] sm:$0xf]
      %v917 = vld [vmem:[%s5 + $0x24] sm:$0xf]
      %v918 = vld [vmem:[%s5 + $0x28] sm:$0xf]
      %v919 = vld [vmem:[%s5 + $0x2c] sm:$0xf]
      %v920 = vld [vmem:[%s5 + $0x30] sm:$0xf]
      %v921 = vld [vmem:[%s5 + $0x34] sm:$0xf]
      %v922 = vld [vmem:[%s5 + $0x38] sm:$0xf]
      %v923 = vld [vmem:[%s5 + $0x3c] sm:$0xf]
      %v924 = vld [vmem:[%s6] sm:$0x1]
      %v926 = vlaneseq
      %v927 = vshrl.u32 %v926, 7
      %v928 = vsub.s32 0, %v927
      %v929 = vrot.slane %v924, %v928
      %v947 = vunpack.c.l.b16 %v908
      %v948 = vunpack.c.l.b16 %v909
      %v949 = vunpack.c.l.b16 %v910
      %v950 = vunpack.c.l.b16 %v911
      %v951 = vunpack.c.l.b16 %v912
      %v952 = vunpack.c.l.b16 %v913
      %v953 = vunpack.c.l.b16 %v914
      %v954 = vunpack.c.l.b16 %v915
      %v955 = vunpack.c.l.b16 %v916
      %v956 = vunpack.c.l.b16 %v917
      %v957 = vunpack.c.l.b16 %v918
      %v958 = vunpack.c.l.b16 %v919
      %v959 = vunpack.c.l.b16 %v920
      %v960 = vunpack.c.l.b16 %v921
      %v961 = vunpack.c.l.b16 %v922
      %v962 = vunpack.c.l.b16 %v923
      %v963 = vpack.c.b16 %v948, %v947
      %v964 = vpack.c.b16 %v950, %v949
      %v965 = vpack.c.b16 %v952, %v951
      %v966 = vpack.c.b16 %v954, %v953
      %v967 = vpack.c.b16 %v956, %v955
      %v968 = vpack.c.b16 %v958, %v957
      %v969 = vpack.c.b16 %v960, %v959
      %v970 = vpack.c.b16 %v962, %v961
      %979 = vmatprep.subr.bf16.mxu0 0
      %980 = vmatpush1.bf16.msra.mxu0 %v963
      %981 = vmatprep.subr.bf16.mxu0 0
      %982 = vmatpush1.bf16.msra.mxu0 %v964
      %983 = vmatprep.subr.bf16.mxu0 0
      %984 = vmatpush1.bf16.msra.mxu0 %v965
      %985 = vmatprep.subr.bf16.mxu0 0
      %986 = vmatpush1.bf16.msra.mxu0 %v966
      %987 = vmatprep.subr.bf16.mxu0 0
      %988 = vmatpush1.bf16.msra.mxu0 %v967
      %989 = vmatprep.subr.bf16.mxu0 0
      %990 = vmatpush1.bf16.msra.mxu0 %v968
      %991 = vmatprep.subr.bf16.mxu0 0
      %992 = vmatpush1.bf16.msra.mxu0 %v969
      %993 = vmatprep.subr.bf16.mxu0 0
      %994 = vmatpush1.bf16.msra.mxu0 %v970
      %995 = vmatprep.subr.bf16.mxu0 0
      %996 = vmatpush1.bf16.msra.mxu0 0
      %997 = vmatprep.subr.bf16.mxu0 0
      %998 = vmatpush1.bf16.msra.mxu0 0
      %999 = vmatprep.subr.bf16.mxu0 0
      %1000 = vmatpush1.bf16.msra.mxu0 0
      %1001 = vmatprep.subr.bf16.mxu0 0
      %1002 = vmatpush1.bf16.msra.mxu0 0
      %1003 = vmatprep.subr.bf16.mxu0 0
      %1004 = vmatpush1.bf16.msra.mxu0 0
      %1005 = vmatprep.subr.bf16.mxu0 0
      %1006 = vmatpush1.bf16.msra.mxu0 0
      %1007 = vmatprep.subr.bf16.mxu0 0
      %1008 = vmatpush1.bf16.msra.mxu0 0
      %1009 = vmatprep.subr.bf16.mxu0 0
      %1010 = vmatpush1.bf16.msra.mxu0 0
      %1011 = vmatprep.mubr.bf16.mxu0 0
      %1012 = vmatmul.mubr.bf16.gmra.mrb[0].mxu0 %v892
      %v1013 = vpop.f32.mrb[0].mxu0
      %v1014 = vadd.f32 %v929, %v1013
      %v1015 = vpop.f32.mrb[0].mxu0
      %v1016 = vpop.f32.mrb[0].mxu0
      %v1017 = vadd.f32 %v929, %v1016
      %v1018 = vpop.f32.mrb[0].mxu0
      %1019 = vmatprep.mubr.bf16.mxu0 0
      %1020 = vmatmul.mubr.bf16.gmra.mrb[0].mxu0 %v893
      %v1021 = vpop.f32.mrb[0].mxu0
      %v1022 = vadd.f32 %v929, %v1021
      %v1023 = vpop.f32.mrb[0].mxu0
      %v1024 = vpop.f32.mrb[0].mxu0
      %v1025 = vadd.f32 %v929, %v1024
      %v1026 = vpop.f32.mrb[0].mxu0
      %1027 = vmatprep.mubr.bf16.mxu0 0
      %1028 = vmatmul.mubr.bf16.gmra.mrb[0].mxu0 %v894
      %v1029 = vpop.f32.mrb[0].mxu0
      %v1030 = vadd.f32 %v929, %v1029
      %v1031 = vpop.f32.mrb[0].mxu0
      %v1032 = vpop.f32.mrb[0].mxu0
      %v1033 = vadd.f32 %v929, %v1032
      %v1034 = vpop.f32.mrb[0].mxu0
      %1035 = vmatprep.mubr.bf16.mxu0 0
      %1036 = vmatmul.mubr.bf16.gmra.mrb[0].mxu0 %v895
      %v1037 = vpop.f32.mrb[0].mxu0
      %v1038 = vadd.f32 %v929, %v1037
      %v1039 = vpop.f32.mrb[0].mxu0
      %v1040 = vpop.f32.mrb[0].mxu0
      %v1041 = vadd.f32 %v929, %v1040
      %v1042 = vpop.f32.mrb[0].mxu0
      %1043 = vmatprep.mubr.bf16.mxu0 0
      %1044 = vmatmul.mubr.bf16.gmra.mrb[0].mxu0 %v896
      %v1045 = vpop.f32.mrb[0].mxu0
      %v1046 = vadd.f32 %v929, %v1045
      %v1047 = vpop.f32.mrb[0].mxu0
      %v1048 = vpop.f32.mrb[0].mxu0
      %v1049 = vadd.f32 %v929, %v1048
      %v1050 = vpop.f32.mrb[0].mxu0
      %1051 = vmatprep.mubr.bf16.mxu0 0
      %1052 = vmatmul.mubr.bf16.gmra.mrb[0].mxu0 %v897
      %v1053 = vpop.f32.mrb[0].mxu0
      %v1054 = vadd.f32 %v929, %v1053
      %v1055 = vpop.f32.mrb[0].mxu0
      %v1056 = vpop.f32.mrb[0].mxu0
      %v1057 = vadd.f32 %v929, %v1056
      %v1058 = vpop.f32.mrb[0].mxu0
      %1059 = vmatprep.mubr.bf16.mxu0 0
      %1060 = vmatmul.mubr.bf16.gmra.mrb[0].mxu0 %v898
      %v1061 = vpop.f32.mrb[0].mxu0
      %v1062 = vadd.f32 %v929, %v1061
      %v1063 = vpop.f32.mrb[0].mxu0
      %v1064 = vpop.f32.mrb[0].mxu0
      %v1065 = vadd.f32 %v929, %v1064
      %v1066 = vpop.f32.mrb[0].mxu0
      %1067 = vmatprep.mubr.bf16.mxu0 0
      %1068 = vmatmul.mubr.bf16.gmra.mrb[0].mxu0 %v899
      %v1069 = vpop.f32.mrb[0].mxu0
      %v1070 = vadd.f32 %v929, %v1069
      %v1071 = vpop.f32.mrb[0].mxu0
      %v1072 = vpop.f32.mrb[0].mxu0
      %v1073 = vadd.f32 %v929, %v1072
      %v1074 = vpop.f32.mrb[0].mxu0
      %1075 = vmatprep.mubr.bf16.mxu0 0
      %1076 = vmatmul.mubr.bf16.gmra.mrb[0].mxu0 %v900
      %v1077 = vpop.f32.mrb[0].mxu0
      %v1078 = vadd.f32 %v929, %v1077
      %v1079 = vpop.f32.mrb[0].mxu0
      %v1080 = vpop.f32.mrb[0].mxu0
      %v1081 = vadd.f32 %v929, %v1080
      %v1082 = vpop.f32.mrb[0].mxu0
      %1083 = vmatprep.mubr.bf16.mxu0 0
      %1084 = vmatmul.mubr.bf16.gmra.mrb[0].mxu0 %v901
      %v1085 = vpop.f32.mrb[0].mxu0
      %v1086 = vadd.f32 %v929, %v1085
      %v1087 = vpop.f32.mrb[0].mxu0
      %v1088 = vpop.f32.mrb[0].mxu0
      %v1089 = vadd.f32 %v929, %v1088
      %v1090 = vpop.f32.mrb[0].mxu0
      %1091 = vmatprep.mubr.bf16.mxu0 0
      %1092 = vmatmul.mubr.bf16.gmra.mrb[0].mxu0 %v902
      %v1093 = vpop.f32.mrb[0].mxu0
      %v1094 = vadd.f32 %v929, %v1093
      %v1095 = vpop.f32.mrb[0].mxu0
      %v1096 = vpop.f32.mrb[0].mxu0
      %v1097 = vadd.f32 %v929, %v1096
      %v1098 = vpop.f32.mrb[0].mxu0
      %1099 = vmatprep.mubr.bf16.mxu0 0
      %1100 = vmatmul.mubr.bf16.gmra.mrb[0].mxu0 %v903
      %v1101 = vpop.f32.mrb[0].mxu0
      %v1102 = vadd.f32 %v929, %v1101
      %v1103 = vpop.f32.mrb[0].mxu0
      %v1104 = vpop.f32.mrb[0].mxu0
      %v1105 = vadd.f32 %v929, %v1104
      %v1106 = vpop.f32.mrb[0].mxu0
      %1107 = vmatprep.mubr.bf16.mxu0 0
      %1108 = vmatmul.mubr.bf16.gmra.mrb[0].mxu0 %v904
      %v1109 = vpop.f32.mrb[0].mxu0
      %v1110 = vadd.f32 %v929, %v1109
      %v1111 = vpop.f32.mrb[0].mxu0
      %v1112 = vpop.f32.mrb[0].mxu0
      %v1113 = vadd.f32 %v929, %v1112
      %v1114 = vpop.f32.mrb[0].mxu0
      %1115 = vmatprep.mubr.bf16.mxu0 0
      %1116 = vmatmul.mubr.bf16.gmra.mrb[0].mxu0 %v905
      %v1117 = vpop.f32.mrb[0].mxu0
      %v1118 = vadd.f32 %v929, %v1117
      %v1119 = vpop.f32.mrb[0].mxu0
      %v1120 = vpop.f32.mrb[0].mxu0
      %v1121 = vadd.f32 %v929, %v1120
      %v1122 = vpop.f32.mrb[0].mxu0
      %1123 = vmatprep.mubr.bf16.mxu0 0
      %1124 = vmatmul.mubr.bf16.gmra.mrb[0].mxu0 %v906
      %v1125 = vpop.f32.mrb[0].mxu0
      %v1126 = vadd.f32 %v929, %v1125
      %v1127 = vpop.f32.mrb[0].mxu0
      %v1128 = vpop.f32.mrb[0].mxu0
      %v1129 = vadd.f32 %v929, %v1128
      %v1130 = vpop.f32.mrb[0].mxu0
      %1131 = vmatprep.mubr.bf16.mxu0 0
      %1132 = vmatmul.mubr.bf16.gmra.mrb[0].mxu0 %v907
      %v1133 = vpop.f32.mrb[0].mxu0
      %v1134 = vadd.f32 %v929, %v1133
      %v1135 = vpop.f32.mrb[0].mxu0
      %v1136 = vpop.f32.mrb[0].mxu0
      %v1137 = vadd.f32 %v929, %v1136
      %v1138 = vpop.f32.mrb[0].mxu0
      %1139 = vdwg.mxu0
      %1140 = vmax.xlane.f32.xlu0 %v1014
      %v1141 = vpop.xlane.xlu0 %1140
      %1142 = vmax.xlane.f32.xlu0 %v1017
      %v1143 = vpop.xlane.xlu0 %1142
      %1144 = vmax.xlane.f32.xlu0 %v1022
      %v1145 = vpop.xlane.xlu0 %1144
      %1146 = vmax.xlane.f32.xlu0 %v1025
      %v1147 = vpop.xlane.xlu0 %1146
      %1148 = vmax.xlane.f32.xlu0 %v1030
      %v1149 = vpop.xlane.xlu0 %1148
      %1150 = vmax.xlane.f32.xlu0 %v1033
      %v1151 = vpop.xlane.xlu0 %1150
      %1152 = vmax.xlane.f32.xlu0 %v1038
      %v1153 = vpop.xlane.xlu0 %1152
      %1154 = vmax.xlane.f32.xlu0 %v1041
      %v1155 = vpop.xlane.xlu0 %1154
      %1156 = vmax.xlane.f32.xlu0 %v1046
      %v1157 = vpop.xlane.xlu0 %1156
      %1158 = vmax.xlane.f32.xlu0 %v1049
      %v1159 = vpop.xlane.xlu0 %1158
      %1160 = vmax.xlane.f32.xlu0 %v1054
      %v1161 = vpop.xlane.xlu0 %1160
      %1162 = vmax.xlane.f32.xlu0 %v1057
      %v1163 = vpop.xlane.xlu0 %1162
      %1164 = vmax.xlane.f32.xlu0 %v1062
      %v1165 = vpop.xlane.xlu0 %1164
      %1166 = vmax.xlane.f32.xlu0 %v1065
      %v1167 = vpop.xlane.xlu0 %1166
      %1168 = vmax.xlane.f32.xlu0 %v1070
      %v1169 = vpop.xlane.xlu0 %1168
      %1170 = vmax.xlane.f32.xlu0 %v1073
      %v1171 = vpop.xlane.xlu0 %1170
      %1172 = vmax.xlane.f32.xlu0 %v1078
      %v1173 = vpop.xlane.xlu0 %1172
      %1174 = vmax.xlane.f32.xlu0 %v1081
      %v1175 = vpop.xlane.xlu0 %1174
      %1176 = vmax.xlane.f32.xlu0 %v1086
      %v1177 = vpop.xlane.xlu0 %1176
      %1178 = vmax.xlane.f32.xlu0 %v1089
      %v1179 = vpop.xlane.xlu0 %1178
      %1180 = vmax.xlane.f32.xlu0 %v1094
      %v1181 = vpop.xlane.xlu0 %1180
      %1182 = vmax.xlane.f32.xlu0 %v1097
      %v1183 = vpop.xlane.xlu0 %1182
      %1184 = vmax.xlane.f32.xlu0 %v1102
      %v1185 = vpop.xlane.xlu0 %1184
      %1186 = vmax.xlane.f32.xlu0 %v1105
      %v1187 = vpop.xlane.xlu0 %1186
      %1188 = vmax.xlane.f32.xlu0 %v1110
      %v1189 = vpop.xlane.xlu0 %1188
      %1190 = vmax.xlane.f32.xlu0 %v1113
      %v1191 = vpop.xlane.xlu0 %1190
      %1192 = vmax.xlane.f32.xlu0 %v1118
      %v1193 = vpop.xlane.xlu0 %1192
      %1194 = vmax.xlane.f32.xlu0 %v1121
      %v1195 = vpop.xlane.xlu0 %1194
      %1196 = vmax.xlane.f32.xlu0 %v1126
      %v1197 = vpop.xlane.xlu0 %1196
      %1198 = vmax.xlane.f32.xlu0 %v1129
      %v1199 = vpop.xlane.xlu0 %1198
      %1200 = vmax.xlane.f32.xlu0 %v1134
      %v1201 = vpop.xlane.xlu0 %1200
      %1202 = vmax.xlane.f32.xlu0 %v1137
      %v1203 = vpop.xlane.xlu0 %1202
      %v1204 = vsub.f32 %v1014, %v1141
      %v1205 = vsub.f32 %v1017, %v1143
      %v1206 = vsub.f32 %v1022, %v1145
      %v1207 = vsub.f32 %v1025, %v1147
      %v1208 = vsub.f32 %v1030, %v1149
      %v1209 = vsub.f32 %v1033, %v1151
      %v1210 = vsub.f32 %v1038, %v1153
      %v1211 = vsub.f32 %v1041, %v1155
      %v1212 = vsub.f32 %v1046, %v1157
      %v1213 = vsub.f32 %v1049, %v1159
      %v1214 = vsub.f32 %v1054, %v1161
      %v1215 = vsub.f32 %v1057, %v1163
      %v1216 = vsub.f32 %v1062, %v1165
      %v1217 = vsub.f32 %v1065, %v1167
      %v1218 = vsub.f32 %v1070, %v1169
      %v1219 = vsub.f32 %v1073, %v1171
      %v1220 = vsub.f32 %v1078, %v1173
      %v1221 = vsub.f32 %v1081, %v1175
      %v1222 = vsub.f32 %v1086, %v1177
      %v1223 = vsub.f32 %v1089, %v1179
      %v1224 = vsub.f32 %v1094, %v1181
      %v1225 = vsub.f32 %v1097, %v1183
      %v1226 = vsub.f32 %v1102, %v1185
      %v1227 = vsub.f32 %v1105, %v1187
      %v1228 = vsub.f32 %v1110, %v1189
      %v1229 = vsub.f32 %v1113, %v1191
      %v1230 = vsub.f32 %v1118, %v1193
      %v1231 = vsub.f32 %v1121, %v1195
      %v1232 = vsub.f32 %v1126, %v1197
      %v1233 = vsub.f32 %v1129, %v1199
      %v1234 = vsub.f32 %v1134, %v1201
      %v1235 = vsub.f32 %v1137, %v1203
      %v1236 = vmul.f32 %v1204, 1.442695
      %v1237 = vpow.pop %v1236
      %v1238 = vmul.f32 %v1205, 1.442695
      %v1239 = vpow.pop %v1238
      %v1240 = vmul.f32 %v1206, 1.442695
      %v1241 = vpow.pop %v1240
      %v1242 = vmul.f32 %v1207, 1.442695
      %v1243 = vpow.pop %v1242
      %v1244 = vmul.f32 %v1208, 1.442695
      %v1245 = vpow.pop %v1244
      %v1246 = vmul.f32 %v1209, 1.442695
      %v1247 = vpow.pop %v1246
      %v1248 = vmul.f32 %v1210, 1.442695
      %v1249 = vpow.pop %v1248
      %v1250 = vmul.f32 %v1211, 1.442695
      %v1251 = vpow.pop %v1250
      %v1252 = vmul.f32 %v1212, 1.442695
      %v1253 = vpow.pop %v1252
      %v1254 = vmul.f32 %v1213, 1.442695
      %v1255 = vpow.pop %v1254
      %v1256 = vmul.f32 %v1214, 1.442695
      %v1257 = vpow.pop %v1256
      %v1258 = vmul.f32 %v1215, 1.442695
      %v1259 = vpow.pop %v1258
      %v1260 = vmul.f32 %v1216, 1.442695
      %v1261 = vpow.pop %v1260
      %v1262 = vmul.f32 %v1217, 1.442695
      %v1263 = vpow.pop %v1262
      %v1264 = vmul.f32 %v1218, 1.442695
      %v1265 = vpow.pop %v1264
      %v1266 = vmul.f32 %v1219, 1.442695
      %v1267 = vpow.pop %v1266
      %v1268 = vmul.f32 %v1220, 1.442695
      %v1269 = vpow.pop %v1268
      %v1270 = vmul.f32 %v1221, 1.442695
      %v1271 = vpow.pop %v1270
      %v1272 = vmul.f32 %v1222, 1.442695
      %v1273 = vpow.pop %v1272
      %v1274 = vmul.f32 %v1223, 1.442695
      %v1275 = vpow.pop %v1274
      %v1276 = vmul.f32 %v1224, 1.442695
      %v1277 = vpow.pop %v1276
      %v1278 = vmul.f32 %v1225, 1.442695
      %v1279 = vpow.pop %v1278
      %v1280 = vmul.f32 %v1226, 1.442695
      %v1281 = vpow.pop %v1280
      %v1282 = vmul.f32 %v1227, 1.442695
      %v1283 = vpow.pop %v1282
      %v1284 = vmul.f32 %v1228, 1.442695
      %v1285 = vpow.pop %v1284
      %v1286 = vmul.f32 %v1229, 1.442695
      %v1287 = vpow.pop %v1286
      %v1288 = vmul.f32 %v1230, 1.442695
      %v1289 = vpow.pop %v1288
      %v1290 = vmul.f32 %v1231, 1.442695
      %v1291 = vpow.pop %v1290
      %v1292 = vmul.f32 %v1232, 1.442695
      %v1293 = vpow.pop %v1292
      %v1294 = vmul.f32 %v1233, 1.442695
      %v1295 = vpow.pop %v1294
      %v1296 = vmul.f32 %v1234, 1.442695
      %v1297 = vpow.pop %v1296
      %v1298 = vmul.f32 %v1235, 1.442695
      %v1299 = vpow.pop %v1298
      %1300 = vadd.xlane.f32.xlu0 %v1237
      %v1301 = vpop.xlane.xlu0 %1300
      %1302 = vadd.xlane.f32.xlu0 %v1239
      %v1303 = vpop.xlane.xlu0 %1302
      %1304 = vadd.xlane.f32.xlu0 %v1241
      %v1305 = vpop.xlane.xlu0 %1304
      %1306 = vadd.xlane.f32.xlu0 %v1243
      %v1307 = vpop.xlane.xlu0 %1306
      %1308 = vadd.xlane.f32.xlu0 %v1245
      %v1309 = vpop.xlane.xlu0 %1308
      %1310 = vadd.xlane.f32.xlu0 %v1247
      %v1311 = vpop.xlane.xlu0 %1310
      %1312 = vadd.xlane.f32.xlu0 %v1249
      %v1313 = vpop.xlane.xlu0 %1312
      %1314 = vadd.xlane.f32.xlu0 %v1251
      %v1315 = vpop.xlane.xlu0 %1314
      %1316 = vadd.xlane.f32.xlu0 %v1253
      %v1317 = vpop.xlane.xlu0 %1316
      %1318 = vadd.xlane.f32.xlu0 %v1255
      %v1319 = vpop.xlane.xlu0 %1318
      %1320 = vadd.xlane.f32.xlu0 %v1257
      %v1321 = vpop.xlane.xlu0 %1320
      %1322 = vadd.xlane.f32.xlu0 %v1259
      %v1323 = vpop.xlane.xlu0 %1322
      %1324 = vadd.xlane.f32.xlu0 %v1261
      %v1325 = vpop.xlane.xlu0 %1324
      %1326 = vadd.xlane.f32.xlu0 %v1263
      %v1327 = vpop.xlane.xlu0 %1326
      %1328 = vadd.xlane.f32.xlu0 %v1265
      %v1329 = vpop.xlane.xlu0 %1328
      %1330 = vadd.xlane.f32.xlu0 %v1267
      %v1331 = vpop.xlane.xlu0 %1330
      %1332 = vadd.xlane.f32.xlu0 %v1269
      %v1333 = vpop.xlane.xlu0 %1332
      %1334 = vadd.xlane.f32.xlu0 %v1271
      %v1335 = vpop.xlane.xlu0 %1334
      %1336 = vadd.xlane.f32.xlu0 %v1273
      %v1337 = vpop.xlane.xlu0 %1336
      %1338 = vadd.xlane.f32.xlu0 %v1275
      %v1339 = vpop.xlane.xlu0 %1338
      %1340 = vadd.xlane.f32.xlu0 %v1277
      %v1341 = vpop.xlane.xlu0 %1340
      %1342 = vadd.xlane.f32.xlu0 %v1279
      %v1343 = vpop.xlane.xlu0 %1342
      %1344 = vadd.xlane.f32.xlu0 %v1281
      %v1345 = vpop.xlane.xlu0 %1344
      %1346 = vadd.xlane.f32.xlu0 %v1283
      %v1347 = vpop.xlane.xlu0 %1346
      %1348 = vadd.xlane.f32.xlu0 %v1285
      %v1349 = vpop.xlane.xlu0 %1348
      %1350 = vadd.xlane.f32.xlu0 %v1287
      %v1351 = vpop.xlane.xlu0 %1350
      %1352 = vadd.xlane.f32.xlu0 %v1289
      %v1353 = vpop.xlane.xlu0 %1352
      %1354 = vadd.xlane.f32.xlu0 %v1291
      %v1355 = vpop.xlane.xlu0 %1354
      %1356 = vadd.xlane.f32.xlu0 %v1293
      %v1357 = vpop.xlane.xlu0 %1356
      %1358 = vadd.xlane.f32.xlu0 %v1295
      %v1359 = vpop.xlane.xlu0 %1358
      %1360 = vadd.xlane.f32.xlu0 %v1297
      %v1361 = vpop.xlane.xlu0 %1360
      %1362 = vadd.xlane.f32.xlu0 %v1299
      %v1363 = vpop.xlane.xlu0 %1362
      %v1364 = vlog2.pop %v1301
      %v1365 = vmul.f32 %v1364, 0.6931472
      %v1366 = vlog2.pop %v1303
      %v1367 = vmul.f32 %v1366, 0.6931472
      %v1368 = vlog2.pop %v1305
      %v1369 = vmul.f32 %v1368, 0.6931472
      %v1370 = vlog2.pop %v1307
      %v1371 = vmul.f32 %v1370, 0.6931472
      %v1372 = vlog2.pop %v1309
      %v1373 = vmul.f32 %v1372, 0.6931472
      %v1374 = vlog2.pop %v1311
      %v1375 = vmul.f32 %v1374, 0.6931472
      %v1376 = vlog2.pop %v1313
      %v1377 = vmul.f32 %v1376, 0.6931472
      %v1378 = vlog2.pop %v1315
      %v1379 = vmul.f32 %v1378, 0.6931472
      %v1380 = vlog2.pop %v1317
      %v1381 = vmul.f32 %v1380, 0.6931472
      %v1382 = vlog2.pop %v1319
      %v1383 = vmul.f32 %v1382, 0.6931472
      %v1384 = vlog2.pop %v1321
      %v1385 = vmul.f32 %v1384, 0.6931472
      %v1386 = vlog2.pop %v1323
      %v1387 = vmul.f32 %v1386, 0.6931472
      %v1388 = vlog2.pop %v1325
      %v1389 = vmul.f32 %v1388, 0.6931472
      %v1390 = vlog2.pop %v1327
      %v1391 = vmul.f32 %v1390, 0.6931472
      %v1392 = vlog2.pop %v1329
      %v1393 = vmul.f32 %v1392, 0.6931472
      %v1394 = vlog2.pop %v1331
      %v1395 = vmul.f32 %v1394, 0.6931472
      %v1396 = vlog2.pop %v1333
      %v1397 = vmul.f32 %v1396, 0.6931472
      %v1398 = vlog2.pop %v1335
      %v1399 = vmul.f32 %v1398, 0.6931472
      %v1400 = vlog2.pop %v1337
      %v1401 = vmul.f32 %v1400, 0.6931472
      %v1402 = vlog2.pop %v1339
      %v1403 = vmul.f32 %v1402, 0.6931472
      %v1404 = vlog2.pop %v1341
      %v1405 = vmul.f32 %v1404, 0.6931472
      %v1406 = vlog2.pop %v1343
      %v1407 = vmul.f32 %v1406, 0.6931472
      %v1408 = vlog2.pop %v1345
      %v1409 = vmul.f32 %v1408, 0.6931472
      %v1410 = vlog2.pop %v1347
      %v1411 = vmul.f32 %v1410, 0.6931472
      %v1412 = vlog2.pop %v1349
      %v1413 = vmul.f32 %v1412, 0.6931472
      %v1414 = vlog2.pop %v1351
      %v1415 = vmul.f32 %v1414, 0.6931472
      %v1416 = vlog2.pop %v1353
      %v1417 = vmul.f32 %v1416, 0.6931472
      %v1418 = vlog2.pop %v1355
      %v1419 = vmul.f32 %v1418, 0.6931472
      %v1420 = vlog2.pop %v1357
      %v1421 = vmul.f32 %v1420, 0.6931472
      %v1422 = vlog2.pop %v1359
      %v1423 = vmul.f32 %v1422, 0.6931472
      %v1424 = vlog2.pop %v1361
      %v1425 = vmul.f32 %v1424, 0.6931472
      %v1426 = vlog2.pop %v1363
      %v1427 = vmul.f32 %v1426, 0.6931472
      %v1428 = vsub.f32 %v1204, %v1365
      %v1429 = vsub.f32 %v1205, %v1367
      %v1430 = vsub.f32 %v1206, %v1369
      %v1431 = vsub.f32 %v1207, %v1371
      %v1432 = vsub.f32 %v1208, %v1373
      %v1433 = vsub.f32 %v1209, %v1375
      %v1434 = vsub.f32 %v1210, %v1377
      %v1435 = vsub.f32 %v1211, %v1379
      %v1436 = vsub.f32 %v1212, %v1381
      %v1437 = vsub.f32 %v1213, %v1383
      %v1438 = vsub.f32 %v1214, %v1385
      %v1439 = vsub.f32 %v1215, %v1387
      %v1440 = vsub.f32 %v1216, %v1389
      %v1441 = vsub.f32 %v1217, %v1391
      %v1442 = vsub.f32 %v1218, %v1393
      %v1443 = vsub.f32 %v1219, %v1395
      %v1444 = vsub.f32 %v1220, %v1397
      %v1445 = vsub.f32 %v1221, %v1399
      %v1446 = vsub.f32 %v1222, %v1401
      %v1447 = vsub.f32 %v1223, %v1403
      %v1448 = vsub.f32 %v1224, %v1405
      %v1449 = vsub.f32 %v1225, %v1407
      %v1450 = vsub.f32 %v1226, %v1409
      %v1451 = vsub.f32 %v1227, %v1411
      %v1452 = vsub.f32 %v1228, %v1413
      %v1453 = vsub.f32 %v1229, %v1415
      %v1454 = vsub.f32 %v1230, %v1417
      %v1455 = vsub.f32 %v1231, %v1419
      %v1456 = vsub.f32 %v1232, %v1421
      %v1457 = vsub.f32 %v1233, %v1423
      %v1458 = vsub.f32 %v1234, %v1425
      %v1459 = vsub.f32 %v1235, %v1427
      %vm1460 = vcmask 80896
      %1461 = vst.msk [vmem:[%s280] sm:$0xff] %vm1460, %v1428
      %1462 = vst.msk [vmem:[%s280 + $0x8] sm:$0xff] %vm1460, %v1429
      %1463 = vst.msk [vmem:[%s280 + $0x10] sm:$0xff] %vm1460, %v1430
      %1464 = vst.msk [vmem:[%s280 + $0x18] sm:$0xff] %vm1460, %v1431
      %1465 = vst.msk [vmem:[%s280 + $0x20] sm:$0xff] %vm1460, %v1432
      %1466 = vst.msk [vmem:[%s280 + $0x28] sm:$0xff] %vm1460, %v1433
      %1467 = vst.msk [vmem:[%s280 + $0x30] sm:$0xff] %vm1460, %v1434
      %1468 = vst.msk [vmem:[%s280 + $0x38] sm:$0xff] %vm1460, %v1435
      %1469 = vst.msk [vmem:[%s280 + $0x40] sm:$0xff] %vm1460, %v1436
      %1470 = vst.msk [vmem:[%s280 + $0x48] sm:$0xff] %vm1460, %v1437
      %1471 = vst.msk [vmem:[%s280 + $0x50] sm:$0xff] %vm1460, %v1438
      %1472 = vst.msk [vmem:[%s280 + $0x58] sm:$0xff] %vm1460, %v1439
      %1473 = vst.msk [vmem:[%s280 + $0x60] sm:$0xff] %vm1460, %v1440
      %1474 = vst.msk [vmem:[%s280 + $0x68] sm:$0xff] %vm1460, %v1441
      %1475 = vst.msk [vmem:[%s280 + $0x70] sm:$0xff] %vm1460, %v1442
      %1476 = vst.msk [vmem:[%s280 + $0x78] sm:$0xff] %vm1460, %v1443
      %1477 = vst.msk [vmem:[%s280 + $0x80] sm:$0xff] %vm1460, %v1444
      %1478 = vst.msk [vmem:[%s280 + $0x88] sm:$0xff] %vm1460, %v1445
      %1479 = vst.msk [vmem:[%s280 + $0x90] sm:$0xff] %vm1460, %v1446
      %1480 = vst.msk [vmem:[%s280 + $0x98] sm:$0xff] %vm1460, %v1447
      %1481 = vst.msk [vmem:[%s280 + $0xa0] sm:$0xff] %vm1460, %v1448
      %1482 = vst.msk [vmem:[%s280 + $0xa8] sm:$0xff] %vm1460, %v1449
      %1483 = vst.msk [vmem:[%s280 + $0xb0] sm:$0xff] %vm1460, %v1450
      %1484 = vst.msk [vmem:[%s280 + $0xb8] sm:$0xff] %vm1460, %v1451
      %1485 = vst.msk [vmem:[%s280 + $0xc0] sm:$0xff] %vm1460, %v1452
      %1486 = vst.msk [vmem:[%s280 + $0xc8] sm:$0xff] %vm1460, %v1453
      %1487 = vst.msk [vmem:[%s280 + $0xd0] sm:$0xff] %vm1460, %v1454
      %1488 = vst.msk [vmem:[%s280 + $0xd8] sm:$0xff] %vm1460, %v1455
      %1489 = vst.msk [vmem:[%s280 + $0xe0] sm:$0xff] %vm1460, %v1456
      %1490 = vst.msk [vmem:[%s280 + $0xe8] sm:$0xff] %vm1460, %v1457
      %1491 = vst.msk [vmem:[%s280 + $0xf0] sm:$0xff] %vm1460, %v1458
      %1492 = vst.msk [vmem:[%s280 + $0xf8] sm:$0xff] %vm1460, %v1459
      %s1493 = smul.u32 32, %s18
      %p1494 = scmp.lt.s32.totalorder %s1493, 63
      %s1495 = scalar_select %p1494, %s1493, 63
      %s1496 = smul.addr %s1495, 8
      %s1497 = scalar_lea.vmem %s7, %s1496
      // Predicated region
      $region49: #{tpu_custom_call.1} parent=47 // pred_check
        %p1498 = pneg %p188
      $region50: #{tpu_custom_call.1} parent=47 // pred_check_branch
        %1500 = sbr.rel (%p1498) target = $region52
      $region51: #{tpu_custom_call.1} parent=47 // pred_region
        %s1501 = smul.u32 32, %s18
      $region52: #{tpu_custom_call.1} parent=47 // pred_fallthru
        _
    $region48: #{tpu_custom_call.1} parent=5 // pred_fallthru
      _
    %p1502 = scmp.le.s32.totalorder 2, %s13
    // Predicated region
    $region53: #{tpu_custom_call.1} parent=5 // pred_check
      %p1503 = pneg %p1502
    $region54: #{tpu_custom_call.1} parent=5 // pred_check_branch
      %1505 = sbr.rel (%p1503) target = $region56
    $region55: #{tpu_custom_call.1} parent=5 // pred_region
      %s1506 = ssub.s32 %s13, 2
      // Predicated region
      $region57: #{tpu_custom_call.1} parent=55 // pred_check
        %p1507 = pneg %p194
      $region58: #{tpu_custom_call.1} parent=55 // pred_check_branch
        %1509 = sbr.rel (%p1507) target = $region60
      $region59: #{tpu_custom_call.1} parent=55 // pred_region
        %s1510 = smul.u32 32, %s19
        %p1511 = scmp.lt.s32.totalorder %s1510, 63
        %s1512 = scalar_select %p1511, %s1510, 63
        %s1513 = smul.addr %s1512, 8
        %s1514 = scalar_lea.vmem %s7, %s1513
      $region60: #{tpu_custom_call.1} parent=55 // pred_fallthru
        _
    $region56: #{tpu_custom_call.1} parent=5 // pred_fallthru
      _
  $region6: #{tpu_custom_call.1} parent=0 // loop_footer
    %s17 = sadd.s32 1, %s13
  $region7: #{tpu_custom_call.1} parent=0 // loop_footer_branch
    %12 = sbr.rel target = $region3
  $region8: #{tpu_custom_call.1} parent=0 // loop_exit
    _

</llo_original>
